<compile_context>
chip_gen: v6e
topology: v6e:2x2x1
jax: 0.10.0
libtpu: 0.0.40
codegen_flags: <defaults>
</compile_context>

<pallas_src>
import jax
import jax.numpy as jnp
import numpy as np
from jax import lax
from jax.experimental import pallas as pl
from jax.experimental.pallas import tpu as pltpu

BN_EPS = 1e-5
L2_EPS = 1e-12


def gnn_stack_stage(x, ws, gammas, betas, *, tm=256, mxu_dtype=jnp.bfloat16):
    """Whole GNNStackStage forward as a single Pallas call.

    x:      [N, C] f32 node features
    ws:     [L, C, C] f32 stacked weights, stored transposed (so h = x @ ws[l])
    gammas: [L, 1, C] f32 BatchNorm1d weight
    betas:  [L, 1, C] f32 BatchNorm1d bias
    """
    n, c = x.shape
    num_layers = int(ws.shape[0])
    assert ws.shape == (num_layers, c, c)
    assert gammas.shape == (num_layers, 1, c)
    assert betas.shape == (num_layers, 1, c)

    tm = min(tm, n)
    # TODO(synk): ragged row counts need a masked last tile; require divisibility.
    assert n % tm == 0, "row count must be divisible by the row-tile size"
    ntiles = n // tm
    unroll = ntiles <= 8
    nsteps = num_layers + 1
    inv_n = 1.0 / float(n)

    # Weights are MXU operands only; shipping them at the MXU dtype also halves
    # their HBM traffic in bf16 mode.
    ws = ws.astype(mxu_dtype)

    def kernel(x_ref, w_ref, g_ref, b_ref, o_ref,
               act, wfold, shift, ssum, ssq, dma_sem):
        s = pl.program_id(0)
        last = pl.num_programs(0) - 1

        def l2norm_rows(h):
            # F.normalize(p=2, dim=1): rsqrt(max(ss, eps^2)) == 1 / max(||h||, eps)
            ss = jnp.sum(h * h, axis=1, keepdims=True)
            return h * lax.rsqrt(jnp.maximum(ss, L2_EPS * L2_EPS))

        def zero_stats():
            ssum[...] = jnp.zeros_like(ssum)
            ssq[...] = jnp.zeros_like(ssq)

        def accum_stats(h):
            ssum[...] += jnp.sum(h, axis=0, keepdims=True)
            ssq[...] += jnp.sum(h * h, axis=0, keepdims=True)

        def fold_layer_params():
            # Fold training-mode BatchNorm (batch stats, biased variance) into a
            # single scale/shift, and pre-scale the layer weight so the apply
            # matmul emits BN-affine output directly: h_bn = act @ (W*scale) + shift.
            mean = ssum[...] * inv_n
            var = ssq[...] * inv_n - mean * mean
            inv_std = lax.rsqrt(var + BN_EPS)
            scale = g_ref[...] * inv_std                    # (1, C)
            shift[...] = b_ref[...] - mean * scale          # (1, C)
            wfold[...] = (w_ref[...] * scale).astype(mxu_dtype)

        def apply_prev(a, wf, sh):
            # Previous layer's BN-affine + ReLU + row L2 norm, then skipsum.
            h = jnp.dot(a.astype(mxu_dtype), wf,
                        preferred_element_type=jnp.float32) + sh
            h = jnp.maximum(h, 0.0)
            return a + l2norm_rows(h)

        @pl.when(s == 0)
        def _first():
            # Read x from HBM exactly once, straight into the resident activation
            # scratch, then accumulate layer-0 BatchNorm statistics.
            cp = pltpu.make_async_copy(x_ref, act, dma_sem.at[0])
            cp.start()
            cp.wait()
            zero_stats()
            wn = w_ref[...]

            def body(i, carry):
                row = pl.multiple_of(i * tm, tm)
                a = act[pl.ds(row, tm), :]
                h = jnp.dot(a.astype(mxu_dtype), wn,
                            preferred_element_type=jnp.float32)
                accum_stats(h)
                return carry

            lax.fori_loop(0, ntiles, body, 0, unroll=unroll)
            fold_layer_params()

        @pl.when((s >= 1) & (s < last))
        def _middle():
            # Fused step: apply layer s-1 and, on the freshly produced tile (still
            # in vregs), accumulate layer-s statistics -> act read/written once.
            zero_stats()
            wf = wfold[...]
            sh = shift[...]
            wn = w_ref[...]

            def body(i, carry):
                row = pl.multiple_of(i * tm, tm)
                a = act[pl.ds(row, tm), :]
                new = apply_prev(a, wf, sh)
                act[pl.ds(row, tm), :] = new
                h = jnp.dot(new.astype(mxu_dtype), wn,
                            preferred_element_type=jnp.float32)
                accum_stats(h)
                return carry

            lax.fori_loop(0, ntiles, body, 0, unroll=unroll)
            fold_layer_params()

        @pl.when(s == last)
        def _last():
            # Apply the final layer, stage-level L2 norm, write HBM output once.
            wf = wfold[...]
            sh = shift[...]

            def body(i, carry):
                row = pl.multiple_of(i * tm, tm)
                a = act[pl.ds(row, tm), :]
                new = apply_prev(a, wf, sh)
                act[pl.ds(row, tm), :] = l2norm_rows(new)
                return carry

            lax.fori_loop(0, ntiles, body, 0, unroll=unroll)
            cp = pltpu.make_async_copy(act, o_ref, dma_sem.at[0])
            cp.start()
            cp.wait()

    # Per-layer params: block index changes only at layer boundaries (and is
    # clamped on the final step), so each W/gamma/beta is DMA'd once per layer
    # and prefetched while the previous layer computes.
    def layer_map(s):
        l = jnp.minimum(s, num_layers - 1)
        return (l, 0, 0)

    # VMEM budget derived from the real footprint (no hard-coded 32 MiB ceiling);
    # act is the only O(N) buffer now that hbuf is gone.  Cap at the 128 MiB
    # physical size of v5e/v6e (v7x has 64 MiB -- large-N configs must fit there).
    mxu_bytes = jnp.dtype(mxu_dtype).itemsize
    scratch_bytes = (n * c * 4                       # resident activations
                     + c * c * mxu_bytes             # BN-folded weight
                     + 3 * 8 * c * 4)                # shift/ssum/ssq (sublane-padded)
    window_bytes = 2 * (c * c * mxu_bytes + 2 * 8 * c * 4)  # buffered W/gamma/beta
    vmem_limit = int((scratch_bytes + window_bytes) * 1.25) + (4 << 20)
    vmem_limit = min(max(vmem_limit, 32 << 20), 128 << 20)

    return pl.pallas_call(
        kernel,
        out_shape=jax.ShapeDtypeStruct((n, c), jnp.float32),
        grid_spec=pltpu.PrefetchScalarGridSpec(
            num_scalar_prefetch=0,
            grid=(nsteps,),
            in_specs=[
                pl.BlockSpec(memory_space=pl.ANY),        # x: raw HBM, copied once
                pl.BlockSpec((None, c, c), layer_map),    # W_l
                pl.BlockSpec((None, 1, c), layer_map),    # gamma_l
                pl.BlockSpec((None, 1, c), layer_map),    # beta_l
            ],
            out_specs=pl.BlockSpec(memory_space=pl.ANY),  # written once via DMA
            scratch_shapes=[
                pltpu.VMEM((n, c), jnp.float32),   # resident activations (skipsum)
                pltpu.VMEM((c, c), mxu_dtype),     # BN-folded weight of prev layer
                pltpu.VMEM((1, c), jnp.float32),   # BN shift of prev layer
                pltpu.VMEM((1, c), jnp.float32),   # per-channel sum
                pltpu.VMEM((1, c), jnp.float32),   # per-channel sum of squares
                pltpu.SemaphoreType.DMA((1,)),     # x-load / output-store DMA
            ]),
        compiler_params=pltpu.CompilerParams(
            dimension_semantics=("arbitrary",),
            vmem_limit_bytes=vmem_limit),
    )(x, ws, gammas, betas)


def reference(x, ws, gammas, betas):
    act = x
    for l in range(ws.shape[0]):
        h = act @ ws[l]
        mean = h.mean(axis=0, keepdims=True)
        var = ((h - mean) ** 2).mean(axis=0, keepdims=True)
        h = (h - mean) / jnp.sqrt(var + BN_EPS)
        h = h * gammas[l] + betas[l]
        h = jnp.maximum(h, 0.0)
        nrm = jnp.maximum(jnp.sqrt((h * h).sum(axis=1, keepdims=True)), L2_EPS)
        act = act + h / nrm
    nrm = jnp.maximum(jnp.sqrt((act * act).sum(axis=1, keepdims=True)), L2_EPS)
    return act / nrm


if __name__ == "__main__":
    # Small but lane-dense / MXU-friendly shapes: 256 nodes, 128 channels,
    # 3 stacked GeneralLayers (skipsum requires in_channels == out_channels).
    N, C, L = 256, 128, 3
    key = jax.random.PRNGKey(0)
    kx, kw, kg, kb = jax.random.split(key, 4)

    x = jax.random.normal(kx, (N, C), dtype=jnp.float32)
    # nn.Linear weight is [Cout, Cin]; we store the transposed stack [L, Cin, Cout]
    # so the kernel computes x @ W^T directly.
    ws = jax.random.normal(kw, (L, C, C), dtype=jnp.float32) * (1.0 / np.sqrt(C))
    gammas = 1.0 + 0.1 * jax.random.normal(kg, (L, 1, C), dtype=jnp.float32)
    betas = 0.1 * jax.random.normal(kb, (L, 1, C), dtype=jnp.float32)

    ref = reference(x, ws, gammas, betas)

    # Exactness check: f32 MXU path matches the PyTorch-style reference tightly.
    out_f32 = jax.block_until_ready(
        gnn_stack_stage(x, ws, gammas, betas, mxu_dtype=jnp.float32))
    np.testing.assert_allclose(np.asarray(out_f32), np.asarray(ref),
                               rtol=1e-4, atol=1e-4)

    # Performance default (per review): bf16 MXU operands with f32 accumulation.
    out_bf16 = jax.block_until_ready(
        gnn_stack_stage(x, ws, gammas, betas, mxu_dtype=jnp.bfloat16))
    np.testing.assert_allclose(np.asarray(out_bf16), np.asarray(ref),
                               rtol=2e-2, atol=2e-2)

    print("KERNEL_OK")
</pallas_src>

<mosaic_0001>
module attributes {stable_mosaic.version = 11 : i64} {
  func.func @kernel(%arg0: i32, %arg1: memref<256x128xf32, #tpu.memory_space<any>>, %arg2: memref<1x128x128xf32, #tpu.memory_space<vmem>>, %arg3: memref<1x1x128xf32, #tpu.memory_space<vmem>>, %arg4: memref<1x1x128xf32, #tpu.memory_space<vmem>>, %arg5: memref<256x128xf32, #tpu.memory_space<any>>, %arg6: memref<256x128xf32, #tpu.memory_space<vmem>>, %arg7: memref<128x128xf32, #tpu.memory_space<vmem>>, %arg8: memref<1x128xf32, #tpu.memory_space<vmem>>, %arg9: memref<1x128xf32, #tpu.memory_space<vmem>>, %arg10: memref<1x128xf32, #tpu.memory_space<vmem>>, %arg11: memref<1x!tpu.dma_semaphore, #tpu.memory_space<semaphore_mem>>) attributes {dimension_semantics = [#tpu.dimension_semantics<arbitrary>], iteration_bounds = array<i64: 4>, scalar_prefetch = 0 : i64, scratch_operands = 6 : i64, tpu.core_type = #tpu.core_type<tc>, window_params = [{}, {transform_indices = @transform_1, window_bounds = array<i64: 1, 128, 128>}, {transform_indices = @transform_2, window_bounds = array<i64: 1, 1, 128>}, {transform_indices = @transform_3, window_bounds = array<i64: 1, 1, 128>}, {}]} {
    %c0_i32 = arith.constant 0 : i32
    %0 = arith.cmpi eq, %arg0, %c0_i32 : i32
    %1 = arith.extui %0 : i1 to i32
    %c0_i32_0 = arith.constant 0 : i32
    %2 = arith.cmpi ne, %1, %c0_i32_0 : i32
    scf.if %2 {
      %c0_i32_4 = arith.constant 0 : i32
      %11 = tpu.memref_slice %arg11[%c0_i32_4] : memref<1x!tpu.dma_semaphore, #tpu.memory_space<semaphore_mem>> -> memref<1x!tpu.dma_semaphore, #tpu.memory_space<semaphore_mem>>
      %12 = tpu.memref_squeeze %11 : memref<1x!tpu.dma_semaphore, #tpu.memory_space<semaphore_mem>> -> memref<!tpu.dma_semaphore, #tpu.memory_space<semaphore_mem>>
      tpu.enqueue_dma source(%arg1 : memref<256x128xf32, #tpu.memory_space<any>>) target(%arg6 : memref<256x128xf32, #tpu.memory_space<vmem>>) target_semaphore(%12 : memref<!tpu.dma_semaphore, #tpu.memory_space<semaphore_mem>>)
      %c0_i32_5 = arith.constant 0 : i32
      %13 = tpu.memref_slice %arg11[%c0_i32_5] : memref<1x!tpu.dma_semaphore, #tpu.memory_space<semaphore_mem>> -> memref<1x!tpu.dma_semaphore, #tpu.memory_space<semaphore_mem>>
      %14 = tpu.memref_squeeze %13 : memref<1x!tpu.dma_semaphore, #tpu.memory_space<semaphore_mem>> -> memref<!tpu.dma_semaphore, #tpu.memory_space<semaphore_mem>>
      tpu.wait_dma2 semaphore(%14 : memref<!tpu.dma_semaphore, #tpu.memory_space<semaphore_mem>>) src(%arg1 : memref<256x128xf32, #tpu.memory_space<any>>) dst(%arg6 : memref<256x128xf32, #tpu.memory_space<vmem>>)
      %cst = arith.constant 0.000000e+00 : f32
      %15 = vector.broadcast %cst : f32 to vector<1x128xf32>
      %c0 = arith.constant 0 : index
      %c0_6 = arith.constant 0 : index
      %16 = vector.load %arg9[%c0, %c0_6] : memref<1x128xf32, #tpu.memory_space<vmem>>, vector<1x128xf32>
      tpu.vector_store %arg9[%c0, %c0_6], %15 {strides = array<i32>} : memref<1x128xf32, #tpu.memory_space<vmem>>, vector<1x128xf32>,
      %cst_7 = arith.constant 0.000000e+00 : f32
      %17 = vector.broadcast %cst_7 : f32 to vector<1x128xf32>
      %c0_8 = arith.constant 0 : index
      %c0_9 = arith.constant 0 : index
      %18 = vector.load %arg10[%c0_8, %c0_9] : memref<1x128xf32, #tpu.memory_space<vmem>>, vector<1x128xf32>
      tpu.vector_store %arg10[%c0_8, %c0_9], %17 {strides = array<i32>} : memref<1x128xf32, #tpu.memory_space<vmem>>, vector<1x128xf32>,
      %c0_10 = arith.constant 0 : index
      %c0_11 = arith.constant 0 : index
      %c0_12 = arith.constant 0 : index
      %19 = vector.load %arg2[%c0_10, %c0_11, %c0_12] : memref<1x128x128xf32, #tpu.memory_space<vmem>>, vector<1x128x128xf32>
      %20 = vector.shape_cast %19 : vector<1x128x128xf32> to vector<128x128xf32>
      %c0_i32_13 = arith.constant 0 : i32
      %c256_i32 = arith.constant 256 : i32
      %21 = arith.muli %c0_i32_13, %c256_i32 : i32
      %22 = tpu.assume_multiple %21, 256 : i32
      %23 = arith.index_cast %22 : i32 to index
      %c0_14 = arith.constant 0 : index
      %24 = vector.load %arg6[%23, %c0_14] : memref<256x128xf32, #tpu.memory_space<vmem>>, vector<256x128xf32>
      %cst_15 = arith.constant dense<0.000000e+00> : vector<256x128xf32>
      %25 = tpu.matmul %24, %20, %cst_15 {dimension_numbers = #tpu.dot_dimension_numbers<[1], [0], [0], [1], [0, 0, 1, 1], [], []>} : vector<256x128xf32>, vector<128x128xf32>, vector<256x128xf32> -> vector<256x128xf32>
      %c0_16 = arith.constant 0 : index
      %c0_17 = arith.constant 0 : index
      %26 = vector.load %arg9[%c0_16, %c0_17] : memref<1x128xf32, #tpu.memory_space<vmem>>, vector<1x128xf32>
      %cst_18 = arith.constant dense<0.000000e+00> : vector<128xf32>
      %27 = vector.multi_reduction <add>, %25, %cst_18 [0] : vector<256x128xf32> to vector<128xf32>
      %28 = vector.shape_cast %27 : vector<128xf32> to vector<1x128xf32>
      %29 = arith.addf %26, %28 : vector<1x128xf32>
      %c0_19 = arith.constant 0 : index
      %c0_20 = arith.constant 0 : index
      %30 = vector.load %arg9[%c0_19, %c0_20] : memref<1x128xf32, #tpu.memory_space<vmem>>, vector<1x128xf32>
      tpu.vector_store %arg9[%c0_19, %c0_20], %29 {strides = array<i32>} : memref<1x128xf32, #tpu.memory_space<vmem>>, vector<1x128xf32>,
      %c0_21 = arith.constant 0 : index
      %c0_22 = arith.constant 0 : index
      %31 = vector.load %arg10[%c0_21, %c0_22] : memref<1x128xf32, #tpu.memory_space<vmem>>, vector<1x128xf32>
      %32 = arith.mulf %25, %25 : vector<256x128xf32>
      %cst_23 = arith.constant dense<0.000000e+00> : vector<128xf32>
      %33 = vector.multi_reduction <add>, %32, %cst_23 [0] : vector<256x128xf32> to vector<128xf32>
      %34 = vector.shape_cast %33 : vector<128xf32> to vector<1x128xf32>
      %35 = arith.addf %31, %34 : vector<1x128xf32>
      %c0_24 = arith.constant 0 : index
      %c0_25 = arith.constant 0 : index
      %36 = vector.load %arg10[%c0_24, %c0_25] : memref<1x128xf32, #tpu.memory_space<vmem>>, vector<1x128xf32>
      tpu.vector_store %arg10[%c0_24, %c0_25], %35 {strides = array<i32>} : memref<1x128xf32, #tpu.memory_space<vmem>>, vector<1x128xf32>,
      %c1_i32_26 = arith.constant 1 : i32
      %c0_27 = arith.constant 0 : index
      %c0_28 = arith.constant 0 : index
      %37 = vector.load %arg9[%c0_27, %c0_28] : memref<1x128xf32, #tpu.memory_space<vmem>>, vector<1x128xf32>
      %cst_29 = arith.constant 3.906250e-03 : f32
      %38 = vector.broadcast %cst_29 : f32 to vector<1x128xf32>
      %39 = arith.mulf %37, %38 : vector<1x128xf32>
      %c0_30 = arith.constant 0 : index
      %c0_31 = arith.constant 0 : index
      %40 = vector.load %arg10[%c0_30, %c0_31] : memref<1x128xf32, #tpu.memory_space<vmem>>, vector<1x128xf32>
      %cst_32 = arith.constant 3.906250e-03 : f32
      %41 = vector.broadcast %cst_32 : f32 to vector<1x128xf32>
      %42 = arith.mulf %40, %41 : vector<1x128xf32>
      %43 = arith.mulf %39, %39 : vector<1x128xf32>
      %44 = arith.subf %42, %43 : vector<1x128xf32>
      %cst_33 = arith.constant 9.99999974E-6 : f32
      %45 = vector.broadcast %cst_33 : f32 to vector<1x128xf32>
      %46 = arith.addf %44, %45 : vector<1x128xf32>
      %47 = math.rsqrt %46 : vector<1x128xf32>
      %c0_34 = arith.constant 0 : index
      %c0_35 = arith.constant 0 : index
      %c0_36 = arith.constant 0 : index
      %48 = vector.load %arg3[%c0_34, %c0_35, %c0_36] : memref<1x1x128xf32, #tpu.memory_space<vmem>>, vector<1x1x128xf32>
      %49 = vector.shape_cast %48 : vector<1x1x128xf32> to vector<1x128xf32>
      %50 = arith.mulf %49, %47 : vector<1x128xf32>
      %c0_37 = arith.constant 0 : index
      %c0_38 = arith.constant 0 : index
      %c0_39 = arith.constant 0 : index
      %51 = vector.load %arg4[%c0_37, %c0_38, %c0_39] : memref<1x1x128xf32, #tpu.memory_space<vmem>>, vector<1x1x128xf32>
      %52 = vector.shape_cast %51 : vector<1x1x128xf32> to vector<1x128xf32>
      %53 = arith.mulf %39, %50 : vector<1x128xf32>
      %54 = arith.subf %52, %53 : vector<1x128xf32>
      %c0_40 = arith.constant 0 : index
      %c0_41 = arith.constant 0 : index
      %55 = vector.load %arg8[%c0_40, %c0_41] : memref<1x128xf32, #tpu.memory_space<vmem>>, vector<1x128xf32>
      tpu.vector_store %arg8[%c0_40, %c0_41], %54 {strides = array<i32>} : memref<1x128xf32, #tpu.memory_space<vmem>>, vector<1x128xf32>,
      %c0_42 = arith.constant 0 : index
      %c0_43 = arith.constant 0 : index
      %c0_44 = arith.constant 0 : index
      %56 = vector.load %arg2[%c0_42, %c0_43, %c0_44] : memref<1x128x128xf32, #tpu.memory_space<vmem>>, vector<1x128x128xf32>
      %57 = vector.shape_cast %56 : vector<1x128x128xf32> to vector<128x128xf32>
      %58 = vector.broadcast %50 : vector<1x128xf32> to vector<128x128xf32>
      %59 = arith.mulf %57, %58 : vector<128x128xf32>
      %c0_45 = arith.constant 0 : index
      %c0_46 = arith.constant 0 : index
      %60 = vector.load %arg7[%c0_45, %c0_46] : memref<128x128xf32, #tpu.memory_space<vmem>>, vector<128x128xf32>
      tpu.vector_store %arg7[%c0_45, %c0_46], %59 {strides = array<i32>} : memref<128x128xf32, #tpu.memory_space<vmem>>, vector<128x128xf32>,
    } else {
    }
    %c1_i32 = arith.constant 1 : i32
    %3 = arith.cmpi sge, %arg0, %c1_i32 : i32
    %c3_i32 = arith.constant 3 : i32
    %4 = arith.cmpi slt, %arg0, %c3_i32 : i32
    %5 = arith.andi %3, %4 : i1
    %6 = arith.extui %5 : i1 to i32
    %c0_i32_1 = arith.constant 0 : i32
    %7 = arith.cmpi ne, %6, %c0_i32_1 : i32
    scf.if %7 {
      %cst = arith.constant 0.000000e+00 : f32
      %11 = vector.broadcast %cst : f32 to vector<1x128xf32>
      %c0 = arith.constant 0 : index
      %c0_4 = arith.constant 0 : index
      %12 = vector.load %arg9[%c0, %c0_4] : memref<1x128xf32, #tpu.memory_space<vmem>>, vector<1x128xf32>
      tpu.vector_store %arg9[%c0, %c0_4], %11 {strides = array<i32>} : memref<1x128xf32, #tpu.memory_space<vmem>>, vector<1x128xf32>,
      %cst_5 = arith.constant 0.000000e+00 : f32
      %13 = vector.broadcast %cst_5 : f32 to vector<1x128xf32>
      %c0_6 = arith.constant 0 : index
      %c0_7 = arith.constant 0 : index
      %14 = vector.load %arg10[%c0_6, %c0_7] : memref<1x128xf32, #tpu.memory_space<vmem>>, vector<1x128xf32>
      tpu.vector_store %arg10[%c0_6, %c0_7], %13 {strides = array<i32>} : memref<1x128xf32, #tpu.memory_space<vmem>>, vector<1x128xf32>,
      %c0_8 = arith.constant 0 : index
      %c0_9 = arith.constant 0 : index
      %15 = vector.load %arg7[%c0_8, %c0_9] : memref<128x128xf32, #tpu.memory_space<vmem>>, vector<128x128xf32>
      %c0_10 = arith.constant 0 : index
      %c0_11 = arith.constant 0 : index
      %16 = vector.load %arg8[%c0_10, %c0_11] : memref<1x128xf32, #tpu.memory_space<vmem>>, vector<1x128xf32>
      %c0_12 = arith.constant 0 : index
      %c0_13 = arith.constant 0 : index
      %c0_14 = arith.constant 0 : index
      %17 = vector.load %arg2[%c0_12, %c0_13, %c0_14] : memref<1x128x128xf32, #tpu.memory_space<vmem>>, vector<1x128x128xf32>
      %18 = vector.shape_cast %17 : vector<1x128x128xf32> to vector<128x128xf32>
      %c0_i32_15 = arith.constant 0 : i32
      %c256_i32 = arith.constant 256 : i32
      %19 = arith.muli %c0_i32_15, %c256_i32 : i32
      %20 = tpu.assume_multiple %19, 256 : i32
      %21 = arith.index_cast %20 : i32 to index
      %c0_16 = arith.constant 0 : index
      %22 = vector.load %arg6[%21, %c0_16] : memref<256x128xf32, #tpu.memory_space<vmem>>, vector<256x128xf32>
      %cst_17 = arith.constant dense<0.000000e+00> : vector<256x128xf32>
      %23 = tpu.matmul %22, %15, %cst_17 {dimension_numbers = #tpu.dot_dimension_numbers<[1], [0], [0], [1], [0, 0, 1, 1], [], []>} : vector<256x128xf32>, vector<128x128xf32>, vector<256x128xf32> -> vector<256x128xf32>
      %24 = vector.broadcast %16 : vector<1x128xf32> to vector<256x128xf32>
      %25 = arith.addf %23, %24 : vector<256x128xf32>
      %cst_18 = arith.constant 0.000000e+00 : f32
      %26 = vector.broadcast %cst_18 : f32 to vector<256x128xf32>
      %27 = arith.maximumf %25, %26 : vector<256x128xf32>
      %28 = arith.mulf %27, %27 : vector<256x128xf32>
      %cst_19 = arith.constant dense<0.000000e+00> : vector<256xf32>
      %29 = vector.multi_reduction <add>, %28, %cst_19 [1] : vector<256x128xf32> to vector<256xf32>
      %30 = vector.shape_cast %29 : vector<256xf32> to vector<256x1xf32>
      %cst_20 = arith.constant 1.000000e-24 : f32
      %31 = vector.broadcast %cst_20 : f32 to vector<256x1xf32>
      %32 = arith.maximumf %30, %31 : vector<256x1xf32>
      %33 = math.rsqrt %32 : vector<256x1xf32>
      %34 = vector.broadcast %33 : vector<256x1xf32> to vector<256x128xf32>
      %35 = arith.mulf %27, %34 : vector<256x128xf32>
      %36 = arith.addf %22, %35 : vector<256x128xf32>
      %37 = arith.index_cast %20 : i32 to index
      %c0_21 = arith.constant 0 : index
      %38 = vector.load %arg6[%37, %c0_21] : memref<256x128xf32, #tpu.memory_space<vmem>>, vector<256x128xf32>
      tpu.vector_store %arg6[%37, %c0_21], %36 {strides = array<i32>} : memref<256x128xf32, #tpu.memory_space<vmem>>, vector<256x128xf32>,
      %cst_22 = arith.constant dense<0.000000e+00> : vector<256x128xf32>
      %39 = tpu.matmul %36, %18, %cst_22 {dimension_numbers = #tpu.dot_dimension_numbers<[1], [0], [0], [1], [0, 0, 1, 1], [], []>} : vector<256x128xf32>, vector<128x128xf32>, vector<256x128xf32> -> vector<256x128xf32>
      %c0_23 = arith.constant 0 : index
      %c0_24 = arith.constant 0 : index
      %40 = vector.load %arg9[%c0_23, %c0_24] : memref<1x128xf32, #tpu.memory_space<vmem>>, vector<1x128xf32>
      %cst_25 = arith.constant dense<0.000000e+00> : vector<128xf32>
      %41 = vector.multi_reduction <add>, %39, %cst_25 [0] : vector<256x128xf32> to vector<128xf32>
      %42 = vector.shape_cast %41 : vector<128xf32> to vector<1x128xf32>
      %43 = arith.addf %40, %42 : vector<1x128xf32>
      %c0_26 = arith.constant 0 : index
      %c0_27 = arith.constant 0 : index
      %44 = vector.load %arg9[%c0_26, %c0_27] : memref<1x128xf32, #tpu.memory_space<vmem>>, vector<1x128xf32>
      tpu.vector_store %arg9[%c0_26, %c0_27], %43 {strides = array<i32>} : memref<1x128xf32, #tpu.memory_space<vmem>>, vector<1x128xf32>,
      %c0_28 = arith.constant 0 : index
      %c0_29 = arith.constant 0 : index
      %45 = vector.load %arg10[%c0_28, %c0_29] : memref<1x128xf32, #tpu.memory_space<vmem>>, vector<1x128xf32>
      %46 = arith.mulf %39, %39 : vector<256x128xf32>
      %cst_30 = arith.constant dense<0.000000e+00> : vector<128xf32>
      %47 = vector.multi_reduction <add>, %46, %cst_30 [0] : vector<256x128xf32> to vector<128xf32>
      %48 = vector.shape_cast %47 : vector<128xf32> to vector<1x128xf32>
      %49 = arith.addf %45, %48 : vector<1x128xf32>
      %c0_31 = arith.constant 0 : index
      %c0_32 = arith.constant 0 : index
      %50 = vector.load %arg10[%c0_31, %c0_32] : memref<1x128xf32, #tpu.memory_space<vmem>>, vector<1x128xf32>
      tpu.vector_store %arg10[%c0_31, %c0_32], %49 {strides = array<i32>} : memref<1x128xf32, #tpu.memory_space<vmem>>, vector<1x128xf32>,
      %c1_i32_33 = arith.constant 1 : i32
      %c0_34 = arith.constant 0 : index
      %c0_35 = arith.constant 0 : index
      %51 = vector.load %arg9[%c0_34, %c0_35] : memref<1x128xf32, #tpu.memory_space<vmem>>, vector<1x128xf32>
      %cst_36 = arith.constant 3.906250e-03 : f32
      %52 = vector.broadcast %cst_36 : f32 to vector<1x128xf32>
      %53 = arith.mulf %51, %52 : vector<1x128xf32>
      %c0_37 = arith.constant 0 : index
      %c0_38 = arith.constant 0 : index
      %54 = vector.load %arg10[%c0_37, %c0_38] : memref<1x128xf32, #tpu.memory_space<vmem>>, vector<1x128xf32>
      %cst_39 = arith.constant 3.906250e-03 : f32
      %55 = vector.broadcast %cst_39 : f32 to vector<1x128xf32>
      %56 = arith.mulf %54, %55 : vector<1x128xf32>
      %57 = arith.mulf %53, %53 : vector<1x128xf32>
      %58 = arith.subf %56, %57 : vector<1x128xf32>
      %cst_40 = arith.constant 9.99999974E-6 : f32
      %59 = vector.broadcast %cst_40 : f32 to vector<1x128xf32>
      %60 = arith.addf %58, %59 : vector<1x128xf32>
      %61 = math.rsqrt %60 : vector<1x128xf32>
      %c0_41 = arith.constant 0 : index
      %c0_42 = arith.constant 0 : index
      %c0_43 = arith.constant 0 : index
      %62 = vector.load %arg3[%c0_41, %c0_42, %c0_43] : memref<1x1x128xf32, #tpu.memory_space<vmem>>, vector<1x1x128xf32>
      %63 = vector.shape_cast %62 : vector<1x1x128xf32> to vector<1x128xf32>
      %64 = arith.mulf %63, %61 : vector<1x128xf32>
      %c0_44 = arith.constant 0 : index
      %c0_45 = arith.constant 0 : index
      %c0_46 = arith.constant 0 : index
      %65 = vector.load %arg4[%c0_44, %c0_45, %c0_46] : memref<1x1x128xf32, #tpu.memory_space<vmem>>, vector<1x1x128xf32>
      %66 = vector.shape_cast %65 : vector<1x1x128xf32> to vector<1x128xf32>
      %67 = arith.mulf %53, %64 : vector<1x128xf32>
      %68 = arith.subf %66, %67 : vector<1x128xf32>
      %c0_47 = arith.constant 0 : index
      %c0_48 = arith.constant 0 : index
      %69 = vector.load %arg8[%c0_47, %c0_48] : memref<1x128xf32, #tpu.memory_space<vmem>>, vector<1x128xf32>
      tpu.vector_store %arg8[%c0_47, %c0_48], %68 {strides = array<i32>} : memref<1x128xf32, #tpu.memory_space<vmem>>, vector<1x128xf32>,
      %c0_49 = arith.constant 0 : index
      %c0_50 = arith.constant 0 : index
      %c0_51 = arith.constant 0 : index
      %70 = vector.load %arg2[%c0_49, %c0_50, %c0_51] : memref<1x128x128xf32, #tpu.memory_space<vmem>>, vector<1x128x128xf32>
      %71 = vector.shape_cast %70 : vector<1x128x128xf32> to vector<128x128xf32>
      %72 = vector.broadcast %64 : vector<1x128xf32> to vector<128x128xf32>
      %73 = arith.mulf %71, %72 : vector<128x128xf32>
      %c0_52 = arith.constant 0 : index
      %c0_53 = arith.constant 0 : index
      %74 = vector.load %arg7[%c0_52, %c0_53] : memref<128x128xf32, #tpu.memory_space<vmem>>, vector<128x128xf32>
      tpu.vector_store %arg7[%c0_52, %c0_53], %73 {strides = array<i32>} : memref<128x128xf32, #tpu.memory_space<vmem>>, vector<128x128xf32>,
    } else {
    }
    %c3_i32_2 = arith.constant 3 : i32
    %8 = arith.cmpi eq, %arg0, %c3_i32_2 : i32
    %9 = arith.extui %8 : i1 to i32
    %c0_i32_3 = arith.constant 0 : i32
    %10 = arith.cmpi ne, %9, %c0_i32_3 : i32
    scf.if %10 {
      %c0 = arith.constant 0 : index
      %c0_4 = arith.constant 0 : index
      %11 = vector.load %arg7[%c0, %c0_4] : memref<128x128xf32, #tpu.memory_space<vmem>>, vector<128x128xf32>
      %c0_5 = arith.constant 0 : index
      %c0_6 = arith.constant 0 : index
      %12 = vector.load %arg8[%c0_5, %c0_6] : memref<1x128xf32, #tpu.memory_space<vmem>>, vector<1x128xf32>
      %c0_i32_7 = arith.constant 0 : i32
      %c256_i32 = arith.constant 256 : i32
      %13 = arith.muli %c0_i32_7, %c256_i32 : i32
      %14 = tpu.assume_multiple %13, 256 : i32
      %15 = arith.index_cast %14 : i32 to index
      %c0_8 = arith.constant 0 : index
      %16 = vector.load %arg6[%15, %c0_8] : memref<256x128xf32, #tpu.memory_space<vmem>>, vector<256x128xf32>
      %cst = arith.constant dense<0.000000e+00> : vector<256x128xf32>
      %17 = tpu.matmul %16, %11, %cst {dimension_numbers = #tpu.dot_dimension_numbers<[1], [0], [0], [1], [0, 0, 1, 1], [], []>} : vector<256x128xf32>, vector<128x128xf32>, vector<256x128xf32> -> vector<256x128xf32>
      %18 = vector.broadcast %12 : vector<1x128xf32> to vector<256x128xf32>
      %19 = arith.addf %17, %18 : vector<256x128xf32>
      %cst_9 = arith.constant 0.000000e+00 : f32
      %20 = vector.broadcast %cst_9 : f32 to vector<256x128xf32>
      %21 = arith.maximumf %19, %20 : vector<256x128xf32>
      %22 = arith.mulf %21, %21 : vector<256x128xf32>
      %cst_10 = arith.constant dense<0.000000e+00> : vector<256xf32>
      %23 = vector.multi_reduction <add>, %22, %cst_10 [1] : vector<256x128xf32> to vector<256xf32>
      %24 = vector.shape_cast %23 : vector<256xf32> to vector<256x1xf32>
      %cst_11 = arith.constant 1.000000e-24 : f32
      %25 = vector.broadcast %cst_11 : f32 to vector<256x1xf32>
      %26 = arith.maximumf %24, %25 : vector<256x1xf32>
      %27 = math.rsqrt %26 : vector<256x1xf32>
      %28 = vector.broadcast %27 : vector<256x1xf32> to vector<256x128xf32>
      %29 = arith.mulf %21, %28 : vector<256x128xf32>
      %30 = arith.addf %16, %29 : vector<256x128xf32>
      %31 = arith.mulf %30, %30 : vector<256x128xf32>
      %cst_12 = arith.constant dense<0.000000e+00> : vector<256xf32>
      %32 = vector.multi_reduction <add>, %31, %cst_12 [1] : vector<256x128xf32> to vector<256xf32>
      %33 = vector.shape_cast %32 : vector<256xf32> to vector<256x1xf32>
      %cst_13 = arith.constant 1.000000e-24 : f32
      %34 = vector.broadcast %cst_13 : f32 to vector<256x1xf32>
      %35 = arith.maximumf %33, %34 : vector<256x1xf32>
      %36 = math.rsqrt %35 : vector<256x1xf32>
      %37 = vector.broadcast %36 : vector<256x1xf32> to vector<256x128xf32>
      %38 = arith.mulf %30, %37 : vector<256x128xf32>
      %39 = arith.index_cast %14 : i32 to index
      %c0_14 = arith.constant 0 : index
      %40 = vector.load %arg6[%39, %c0_14] : memref<256x128xf32, #tpu.memory_space<vmem>>, vector<256x128xf32>
      tpu.vector_store %arg6[%39, %c0_14], %38 {strides = array<i32>} : memref<256x128xf32, #tpu.memory_space<vmem>>, vector<256x128xf32>,
      %c1_i32_15 = arith.constant 1 : i32
      %c0_i32_16 = arith.constant 0 : i32
      %41 = tpu.memref_slice %arg11[%c0_i32_16] : memref<1x!tpu.dma_semaphore, #tpu.memory_space<semaphore_mem>> -> memref<1x!tpu.dma_semaphore, #tpu.memory_space<semaphore_mem>>
      %42 = tpu.memref_squeeze %41 : memref<1x!tpu.dma_semaphore, #tpu.memory_space<semaphore_mem>> -> memref<!tpu.dma_semaphore, #tpu.memory_space<semaphore_mem>>
      tpu.enqueue_dma source(%arg6 : memref<256x128xf32, #tpu.memory_space<vmem>>) target(%arg5 : memref<256x128xf32, #tpu.memory_space<any>>) target_semaphore(%42 : memref<!tpu.dma_semaphore, #tpu.memory_space<semaphore_mem>>)
      %c0_i32_17 = arith.constant 0 : i32
      %43 = tpu.memref_slice %arg11[%c0_i32_17] : memref<1x!tpu.dma_semaphore, #tpu.memory_space<semaphore_mem>> -> memref<1x!tpu.dma_semaphore, #tpu.memory_space<semaphore_mem>>
      %44 = tpu.memref_squeeze %43 : memref<1x!tpu.dma_semaphore, #tpu.memory_space<semaphore_mem>> -> memref<!tpu.dma_semaphore, #tpu.memory_space<semaphore_mem>>
      tpu.wait_dma2 semaphore(%44 : memref<!tpu.dma_semaphore, #tpu.memory_space<semaphore_mem>>) src(%arg6 : memref<256x128xf32, #tpu.memory_space<vmem>>) dst(%arg5 : memref<256x128xf32, #tpu.memory_space<any>>)
    } else {
    }
    return
  }
  func.func @transform_1(%arg0: i32) -> (i32, i32, i32) {
    %c2_i32 = arith.constant 2 : i32
    %0 = arith.minsi %arg0, %c2_i32 : i32
    %c0_i32 = arith.constant 0 : i32
    %c0_i32_0 = arith.constant 0 : i32
    %c0_i32_1 = arith.constant 0 : i32
    return %0, %c0_i32, %c0_i32_0 : i32, i32, i32
  }
  func.func @transform_2(%arg0: i32) -> (i32, i32, i32) {
    %c2_i32 = arith.constant 2 : i32
    %0 = arith.minsi %arg0, %c2_i32 : i32
    %c0_i32 = arith.constant 0 : i32
    %c0_i32_0 = arith.constant 0 : i32
    %c0_i32_1 = arith.constant 0 : i32
    return %0, %c0_i32, %c0_i32_0 : i32, i32, i32
  }
  func.func @transform_3(%arg0: i32) -> (i32, i32, i32) {
    %c2_i32 = arith.constant 2 : i32
    %0 = arith.minsi %arg0, %c2_i32 : i32
    %c0_i32 = arith.constant 0 : i32
    %c0_i32_0 = arith.constant 0 : i32
    %c0_i32_1 = arith.constant 0 : i32
    return %0, %c0_i32, %c0_i32_0 : i32, i32, i32
  }
}

</mosaic_0001>

<llo_original>
// kernel: tpu_custom_call.1
$region0: #{tpu_custom_call.1}
  #allocation0 [shape = 'u32[]', space=smem, size = 0x4, offset = 0x4, fixed_abs, tag = 'smem constant byte address 0x4 - core index']
  #allocation1 [shape = 'u32[144,128]{1,0:T(1,128)}', space=vmem, size = 0x12000, scoped, tag = 'internal scratch']
  #allocation2 [shape = 'f32[256,128]{1,0:T(8,128)}', space=vmem, size = 0x20000, scoped, tag = 'scratch operand']
  #allocation3 [shape = 'f32[128,128]{1,0:T(8,128)}', space=vmem, size = 0x10000, scoped, tag = 'scratch operand']
  #allocation4 [shape = 'f32[1,128]{1,0:T(1,128)}', space=vmem, size = 0x200, scoped, tag = 'scratch operand']
  #allocation5 [shape = 'f32[1,128]{1,0:T(1,128)}', space=vmem, size = 0x200, scoped, tag = 'scratch operand']
  #allocation6 [shape = 'f32[1,128]{1,0:T(1,128)}', space=vmem, size = 0x200, scoped, tag = 'scratch operand']
  #allocation7 [shape = 's32[1]{0}', space=sflag, size = 0x4, scoped, tag = 'scratch operand']
  #allocation12 [shape = 's32[]', space=sflag, size = 0x4, offset = 0, fixed_abs, tag = 'sflag constant byte address 0x0 - dummy sync flag']
  #allocation13 [shape = 's32[]', space=sflag, size = 0x4, offset = 0, fixed_abs, tag = 'sflag constant byte address 0x0 - dummy sync flag']
  #allocation14 [shape = 'u32[]', space=smem, size = 0x4, offset = 0x44, fixed_abs, tag = 'smem constant byte address 0x44 - assertion arg 0']
  #allocation15 [shape = 'u32[]', space=smem, size = 0x4, offset = 0x48, fixed_abs, tag = 'smem constant byte address 0x48 - assertion arg 1']
  #allocation16 [shape = 's32[]', space=sflag, size = 0x4, offset = 0, fixed_abs, tag = 'sflag constant byte address 0x0 - dummy sync flag']
  #allocation17 [shape = 's32[]', space=sflag, size = 0x4, offset = 0, fixed_abs, tag = 'sflag constant byte address 0x0 - dummy sync flag']
  %s0 = inlined_call_operand.hbm [shape: f32[256,128], index: 0, kind: input, shape index: {}]
  %s1 = inlined_call_operand.hbm [shape: f32[3,128,128], index: 1, kind: input, shape index: {}]
  %s2 = inlined_call_operand.vmem [shape: f32[3,1,128], index: 2, kind: input, shape index: {}]
  %s3 = inlined_call_operand.hbm [shape: f32[3,1,128], index: 3, kind: input, shape index: {}]
  %s4 = inlined_call_operand.hbm [shape: f32[256,128], index: 4, kind: output, shape index: {}]
  %s5 = sld [smem:[#allocation0]]
  $region61: #{tpu_custom_call.1} parent=0
    _
  %s7 = ssub.s32 1, %s5
  %s8 = scalar_select 0, %s7, %s5
  $region1: #{tpu_custom_call.1} parent=0
    #allocation8 [shape = 'u8[131072]{0}', space=vmem, size = 0x20000, scoped, tag = 'input window, operand 1']
    #allocation9 [shape = 's32[2]{0}', space=sflag, size = 0x8, scoped, tag = 'scoped memory for tpu_custom_call.1']
    #allocation10 [shape = 'u8[1024]{0}', space=vmem, size = 0x400, scoped, tag = 'input window, operand 3']
    #allocation11 [shape = 's32[2]{0}', space=sflag, size = 0x8, scoped, tag = 'scoped memory for tpu_custom_call.1']
    %9 = vsyncpa [#allocation9], 0
    %s10 = scalar_lea.sflag [#allocation9], 1
    %11 = vsyncpa %s10, 0
    %12 = vsyncpa [#allocation11], 0
    %s13 = scalar_lea.sflag [#allocation11], 1
    %14 = vsyncpa %s13, 0
    loop: start=0, step=1, limit=5
    $region2: #{tpu_custom_call.1} parent=1 // loop_pre_header
      _
    $region3: #{tpu_custom_call.1} parent=1 // loop_header
      %s16 = sphi 0, %s20
      %p17 = scmp.ge.s32.totalorder %s16, 5
      %s29 = sphi 0, %s31
      %s32 = sphi 0, %s29
      %s42 = sphi 0, %s32
      %s52 = sphi 0, %s54
      %s55 = sphi 0, %s52
      %s65 = sphi 0, %s55
      %s75 = sphi 0, %s77
      %s78 = sphi 0, %s75
      %s88 = sphi 0, %s78
    $region4: #{tpu_custom_call.1} parent=1 // loop_header_branch
      %19 = sbr.rel (%p17) target = $region8
    $region5: #{tpu_custom_call.1} parent=1 // loop_body
      %s21 = ssub.s32 %s16, 1
      %s22 = sadd.s32 %s16, 1
      %p23 = scmp.lt.s32.totalorder %s16, 2
      %s24 = scalar_select %p23, %s16, 2
      %p25 = scmp.lt.s32.totalorder %s22, 2
      %s26 = scalar_select %p25, %s22, 2
      %s27 = ssub.s32 %s24, %s26
      %p28 = scmp.eq.s32.totalorder %s27, 0
      %s30 = sadd.s32 %s29, 1
      %s31 = scalar_select %p28, %s29, %s30
      %p33 = pneg %p28
      %p34 = scmp.eq.s32.totalorder %s16, 3
      %p35 = por %p33, %p34
      %p36 = scmp.ne.s32.totalorder %s29, %s32
      %p37 = scmp.eq.s32.totalorder %s16, 0
      %p38 = por %p36, %p37
      %p39 = scmp.ne.s32.totalorder %s29, %s32
      %p40 = scmp.eq.s32.totalorder %s21, 3
      %p41 = por %p39, %p40
      %p43 = scmp.ne.s32.totalorder %s32, %s42
      %p44 = scmp.eq.s32.totalorder %s21, 0
      %p45 = por %p43, %p44
      %p46 = scmp.lt.s32.totalorder %s16, 2
      %s47 = scalar_select %p46, %s16, 2
      %p48 = scmp.lt.s32.totalorder %s22, 2
      %s49 = scalar_select %p48, %s22, 2
      %s50 = ssub.s32 %s47, %s49
      %p51 = scmp.eq.s32.totalorder %s50, 0
      %s53 = sadd.s32 %s52, 1
      %s54 = scalar_select %p51, %s52, %s53
      %p56 = pneg %p51
      %p57 = scmp.eq.s32.totalorder %s16, 3
      %p58 = por %p56, %p57
      %p59 = scmp.ne.s32.totalorder %s52, %s55
      %p60 = scmp.eq.s32.totalorder %s16, 0
      %p61 = por %p59, %p60
      %p62 = scmp.ne.s32.totalorder %s52, %s55
      %p63 = scmp.eq.s32.totalorder %s21, 3
      %p64 = por %p62, %p63
      %p66 = scmp.ne.s32.totalorder %s55, %s65
      %p67 = scmp.eq.s32.totalorder %s21, 0
      %p68 = por %p66, %p67
      %p69 = scmp.lt.s32.totalorder %s16, 2
      %s70 = scalar_select %p69, %s16, 2
      %p71 = scmp.lt.s32.totalorder %s22, 2
      %s72 = scalar_select %p71, %s22, 2
      %s73 = ssub.s32 %s70, %s72
      %p74 = scmp.eq.s32.totalorder %s73, 0
      %s76 = sadd.s32 %s75, 1
      %s77 = scalar_select %p74, %s75, %s76
      %p79 = pneg %p74
      %p80 = scmp.eq.s32.totalorder %s16, 3
      %p81 = por %p79, %p80
      %p82 = scmp.ne.s32.totalorder %s75, %s78
      %p83 = scmp.eq.s32.totalorder %s16, 0
      %p84 = por %p82, %p83
      %p85 = scmp.ne.s32.totalorder %s75, %s78
      %p86 = scmp.eq.s32.totalorder %s21, 3
      %p87 = por %p85, %p86
      %p89 = scmp.ne.s32.totalorder %s78, %s88
      %p90 = scmp.eq.s32.totalorder %s21, 0
      %p91 = por %p89, %p90
      %p92 = scmp.le.s32.totalorder 1, %s16
      // Predicated region
      $region9: #{tpu_custom_call.1} parent=5 // pred_check
        %p93 = pneg %p92
      $region10: #{tpu_custom_call.1} parent=5 // pred_check_branch
        %95 = sbr.rel (%p93) target = $region12
      $region11: #{tpu_custom_call.1} parent=5 // pred_region
        %s96 = ssub.s32 %s16, 1
      $region12: #{tpu_custom_call.1} parent=5 // pred_fallthru
        _
      %p97 = scmp.lt.s32.totalorder %s16, 4
      // Predicated region
      $region13: #{tpu_custom_call.1} parent=5 // pred_check
        %p98 = pneg %p97
      $region14: #{tpu_custom_call.1} parent=5 // pred_check_branch
        %100 = sbr.rel (%p98) target = $region16
      $region15: #{tpu_custom_call.1} parent=5 // pred_region
        // Predicated region
        $region17: #{tpu_custom_call.1} parent=15 // pred_check
          %p101 = pneg %p38
        $region18: #{tpu_custom_call.1} parent=15 // pred_check_branch
          %103 = sbr.rel (%p101) target = $region20
        $region19: #{tpu_custom_call.1} parent=15 // pred_region
          %s104 = sand.u32 %s29, 1
          %s105 = scalar_lea.sflag [#allocation9], %s104
          %s106 = sand.u32 %s29, 1
          %s107 = smul.addr %s106, 128
          %s108 = scalar_lea.vmem [#allocation8], %s107
          %p109 = scmp.lt.s32.totalorder %s16, 2
          %s110 = scalar_select %p109, %s16, 2
          %s112 = ssub.s32 2048, 2048
          %113 = vsyncadd %s105, %s112
          %s114 = smul.addr %s110, 16
          %s115 = smul.addr %s114, 128
          %s116 = scalar_lea.hbm %s1, %s115
          %s117 = sshll.u32 %s108, 4
          %s118 = int_to_ptr.vmem [resolvable:$true] %s117
          %123 = dma.hbm_to_vmem [thread:$0]  %s116, 2048, %s118, %s105, 128, 128, 8
        $region20: #{tpu_custom_call.1} parent=15 // pred_fallthru
          _
        // Predicated region
        $region21: #{tpu_custom_call.1} parent=15 // pred_check
          %p124 = pneg %p61
        $region22: #{tpu_custom_call.1} parent=15 // pred_check_branch
          %126 = sbr.rel (%p124) target = $region24
        $region23: #{tpu_custom_call.1} parent=15 // pred_region
          %p127 = scmp.lt.s32.totalorder %s16, 2
          %s128 = scalar_select %p127, %s16, 2
          %p129 = scmp.lt.s32.totalorder %s128, 2
          %s130 = scalar_select %p129, %s128, 2
          %s131 = scalar_lea.vmem %s2, %s130
          %p132 = scmp.lt.s32.totalorder %s16, 2
          %s133 = scalar_select %p132, %s16, 2
        $region24: #{tpu_custom_call.1} parent=15 // pred_fallthru
          _
        // Predicated region
        $region25: #{tpu_custom_call.1} parent=15 // pred_check
          %p134 = pneg %p84
        $region26: #{tpu_custom_call.1} parent=15 // pred_check_branch
          %136 = sbr.rel (%p134) target = $region28
        $region27: #{tpu_custom_call.1} parent=15 // pred_region
          %s137 = sand.u32 %s75, 1
          %s138 = scalar_lea.sflag [#allocation11], %s137
          %s139 = sand.u32 %s75, 1
          %s140 = scalar_lea.vmem [#allocation10], %s139
          %p141 = scmp.lt.s32.totalorder %s16, 2
          %s142 = scalar_select %p141, %s16, 2
          %s144 = ssub.s32 16, 16
          %145 = vsyncadd %s138, %s144
          %s146 = smul.addr %s142, 16
          %s147 = scalar_lea.hbm %s3, %s146
          %s149 = sshll.u32 %s140, 4
          %s150 = int_to_ptr.vmem [resolvable:$true] %s149
          %152 = dma.hbm_to_vmem [thread:$0]  %s147, 16, %s150, %s138
        $region28: #{tpu_custom_call.1} parent=15 // pred_fallthru
          _
      $region16: #{tpu_custom_call.1} parent=5 // pred_fallthru
        _
      %p153 = scmp.le.s32.totalorder 1, %s16
      // Predicated region
      $region29: #{tpu_custom_call.1} parent=5 // pred_check
        %p154 = pneg %p153
      $region30: #{tpu_custom_call.1} parent=5 // pred_check_branch
        %156 = sbr.rel (%p154) target = $region32
      $region31: #{tpu_custom_call.1} parent=5 // pred_region
        %s157 = ssub.s32 %s16, 1
        %s158 = sand.u32 %s32, 1
        %s159 = scalar_lea.sflag [#allocation9], %s158
        %s160 = sand.u32 %s32, 1
        %s161 = smul.addr %s160, 128
        %s162 = scalar_lea.vmem [#allocation8], %s161
        // Predicated region
        $region33: #{tpu_custom_call.1} parent=31 // pred_check
          %p163 = pneg %p45
        $region34: #{tpu_custom_call.1} parent=31 // pred_check_branch
          %165 = sbr.rel (%p163) target = $region36
        $region35: #{tpu_custom_call.1} parent=31 // pred_region
          %166 = dma.done %s159, 2048
        $region36: #{tpu_custom_call.1} parent=31 // pred_fallthru
          _
        %s167 = sand.u32 %s78, 1
        %s168 = scalar_lea.sflag [#allocation11], %s167
        %s169 = sand.u32 %s78, 1
        %s170 = scalar_lea.vmem [#allocation10], %s169
        // Predicated region
        $region37: #{tpu_custom_call.1} parent=31 // pred_check
          %p171 = pneg %p91
        $region38: #{tpu_custom_call.1} parent=31 // pred_check_branch
          %173 = sbr.rel (%p171) target = $region40
        $region39: #{tpu_custom_call.1} parent=31 // pred_region
          %174 = dma.done %s168, 16
        $region40: #{tpu_custom_call.1} parent=31 // pred_fallthru
          _
        %s175 = sand.u32 %s32, 1
        %s176 = scalar_lea.sflag [#allocation9], %s175
        %s177 = sand.u32 %s32, 1
        %s178 = smul.addr %s177, 128
        %s179 = scalar_lea.vmem [#allocation8], %s178
        %p180 = pneg %p45
        %p181 = pneg %p41
        %p182 = scmp.lt.s32.totalorder %s21, 2
        %s183 = scalar_select %p182, %s21, 2
        %p184 = scmp.lt.s32.totalorder %s183, 2
        %s185 = scalar_select %p184, %s183, 2
        %s186 = scalar_lea.vmem %s2, %s185
        %p187 = pneg %p68
        %p188 = pneg %p64
        %s189 = sand.u32 %s78, 1
        %s190 = scalar_lea.sflag [#allocation11], %s189
        %s191 = sand.u32 %s78, 1
        %s192 = scalar_lea.vmem [#allocation10], %s191
        %p193 = pneg %p91
        %p194 = pneg %p87
        %p195 = scmp.lt.s32.totalorder %s21, 2
        %s196 = scalar_select %p195, %s21, 2
        %p197 = scmp.lt.s32.totalorder %s21, 2
        %s198 = scalar_select %p197, %s21, 2
        %p199 = scmp.lt.s32.totalorder %s198, 2
        %s200 = scalar_select %p199, %s198, 2
        %s201 = scalar_lea.vmem %s2, %s200
        %p202 = scmp.lt.s32.totalorder %s21, 2
        %s203 = scalar_select %p202, %s21, 2
        %p204 = scmp.lt.s32.totalorder %s21, 2
        %s205 = scalar_select %p204, %s21, 2
        %p206 = scmp.eq.s32.totalorder %s21, 0
        // Predicated region
        $region41: #{tpu_custom_call.1} parent=31 // pred_check
          %p207 = pneg %p206
        $region42: #{tpu_custom_call.1} parent=31 // pred_check_branch
          %209 = sbr.rel (%p207) target = $region44
        $region43: #{tpu_custom_call.1} parent=31 // pred_region
          // Predicated region
          $region45: #{tpu_custom_call.1} parent=43 // pred_check
            _
          $region46: #{tpu_custom_call.1} parent=43 // pred_check_branch
            %211 = sbr.rel target = $region48
          $region47: #{tpu_custom_call.1} parent=43 // pred_region
            %212 = sst [smem:[#allocation14]] [#allocation13]
            %213 = sst [smem:[#allocation15]] [#allocation12]
          $region48: #{tpu_custom_call.1} parent=43 // pred_fallthru
            _
          %215 = shalt.err (0)
          %s217 = sshll.u32 [#allocation2], 4
          %s218 = int_to_ptr.vmem [resolvable:$true] %s217
          %220 = dma.hbm_to_vmem [thread:$0]  %s0, 4096, %s218, [#allocation7]
          %s221 = smul.u32 256, 1
          %s222 = sshll.u32 %s221, 4
          %223 = dma.done [#allocation7], %s222
          %224 = vst [vmem:[#allocation5] sm:$0x1] 0.0
          %225 = vst [vmem:[#allocation6] sm:$0x1] 0.0
          %v226 = vld [vmem:[%s162] sm:$0xff]
          %v227 = vld [vmem:[%s162 + $0x8] sm:$0xff]
          %v228 = vld [vmem:[%s162 + $0x10] sm:$0xff]
          %v229 = vld [vmem:[%s162 + $0x18] sm:$0xff]
          %v230 = vld [vmem:[%s162 + $0x20] sm:$0xff]
          %v231 = vld [vmem:[%s162 + $0x28] sm:$0xff]
          %v232 = vld [vmem:[%s162 + $0x30] sm:$0xff]
          %v233 = vld [vmem:[%s162 + $0x38] sm:$0xff]
          %v234 = vld [vmem:[%s162 + $0x40] sm:$0xff]
          %v235 = vld [vmem:[%s162 + $0x48] sm:$0xff]
          %v236 = vld [vmem:[%s162 + $0x50] sm:$0xff]
          %v237 = vld [vmem:[%s162 + $0x58] sm:$0xff]
          %v238 = vld [vmem:[%s162 + $0x60] sm:$0xff]
          %v239 = vld [vmem:[%s162 + $0x68] sm:$0xff]
          %v240 = vld [vmem:[%s162 + $0x70] sm:$0xff]
          %v241 = vld [vmem:[%s162 + $0x78] sm:$0xff]
          %v242 = vld [vmem:[#allocation2] sm:$0xff]
          %v243 = vld [vmem:[#allocation2 + $0x8] sm:$0xff]
          %v244 = vld [vmem:[#allocation2 + $0x10] sm:$0xff]
          %v245 = vld [vmem:[#allocation2 + $0x18] sm:$0xff]
          %v246 = vld [vmem:[#allocation2 + $0x20] sm:$0xff]
          %v247 = vld [vmem:[#allocation2 + $0x28] sm:$0xff]
          %v248 = vld [vmem:[#allocation2 + $0x30] sm:$0xff]
          %v249 = vld [vmem:[#allocation2 + $0x38] sm:$0xff]
          %v250 = vld [vmem:[#allocation2 + $0x40] sm:$0xff]
          %v251 = vld [vmem:[#allocation2 + $0x48] sm:$0xff]
          %v252 = vld [vmem:[#allocation2 + $0x50] sm:$0xff]
          %v253 = vld [vmem:[#allocation2 + $0x58] sm:$0xff]
          %v254 = vld [vmem:[#allocation2 + $0x60] sm:$0xff]
          %v255 = vld [vmem:[#allocation2 + $0x68] sm:$0xff]
          %v256 = vld [vmem:[#allocation2 + $0x70] sm:$0xff]
          %v257 = vld [vmem:[#allocation2 + $0x78] sm:$0xff]
          %v258 = vld [vmem:[#allocation2 + $0x80] sm:$0xff]
          %v259 = vld [vmem:[#allocation2 + $0x88] sm:$0xff]
          %v260 = vld [vmem:[#allocation2 + $0x90] sm:$0xff]
          %v261 = vld [vmem:[#allocation2 + $0x98] sm:$0xff]
          %v262 = vld [vmem:[#allocation2 + $0xa0] sm:$0xff]
          %v263 = vld [vmem:[#allocation2 + $0xa8] sm:$0xff]
          %v264 = vld [vmem:[#allocation2 + $0xb0] sm:$0xff]
          %v265 = vld [vmem:[#allocation2 + $0xb8] sm:$0xff]
          %v266 = vld [vmem:[#allocation2 + $0xc0] sm:$0xff]
          %v267 = vld [vmem:[#allocation2 + $0xc8] sm:$0xff]
          %v268 = vld [vmem:[#allocation2 + $0xd0] sm:$0xff]
          %v269 = vld [vmem:[#allocation2 + $0xd8] sm:$0xff]
          %v270 = vld [vmem:[#allocation2 + $0xe0] sm:$0xff]
          %v271 = vld [vmem:[#allocation2 + $0xe8] sm:$0xff]
          %v272 = vld [vmem:[#allocation2 + $0xf0] sm:$0xff]
          %v273 = vld [vmem:[#allocation2 + $0xf8] sm:$0xff]
          %274 = vmatprep.subr.mxu0 0.0
          %275 = vmatpush1.msra.mxu0 %v241
          %276 = vmatprep.subr.mxu0 0.0
          %277 = vmatpush1.msra.mxu0 %v240
          %278 = vmatprep.subr.mxu0 0.0
          %279 = vmatpush1.msra.mxu0 %v239
          %280 = vmatprep.subr.mxu0 0.0
          %281 = vmatpush1.msra.mxu0 %v238
          %282 = vmatprep.subr.mxu0 0.0
          %283 = vmatpush1.msra.mxu0 %v237
          %284 = vmatprep.subr.mxu0 0.0
          %285 = vmatpush1.msra.mxu0 %v236
          %286 = vmatprep.subr.mxu0 0.0
          %287 = vmatpush1.msra.mxu0 %v235
          %288 = vmatprep.subr.mxu0 0.0
          %289 = vmatpush1.msra.mxu0 %v234
          %290 = vmatprep.subr.mxu0 0.0
          %291 = vmatpush1.msra.mxu0 %v233
          %292 = vmatprep.subr.mxu0 0.0
          %293 = vmatpush1.msra.mxu0 %v232
          %294 = vmatprep.subr.mxu0 0.0
          %295 = vmatpush1.msra.mxu0 %v231
          %296 = vmatprep.subr.mxu0 0.0
          %297 = vmatpush1.msra.mxu0 %v230
          %298 = vmatprep.subr.mxu0 0.0
          %299 = vmatpush1.msra.mxu0 %v229
          %300 = vmatprep.subr.mxu0 0.0
          %301 = vmatpush1.msra.mxu0 %v228
          %302 = vmatprep.subr.mxu0 0.0
          %303 = vmatpush1.msra.mxu0 %v227
          %304 = vmatprep.subr.mxu0 0.0
          %305 = vmatpush1.msra.mxu0 %v226
          %306 = vmatprep.subr.mxu0 0.0
          %307 = vmatpush2.msra.mxu0 0.0
          %308 = vmatprep.subr.mxu0 0.0
          %309 = vmatpush2.msra.mxu0 0.0
          %310 = vmatprep.subr.mxu0 0.0
          %311 = vmatpush2.msra.mxu0 0.0
          %312 = vmatprep.subr.mxu0 0.0
          %313 = vmatpush2.msra.mxu0 0.0
          %314 = vmatprep.subr.mxu0 0.0
          %315 = vmatpush2.msra.mxu0 0.0
          %316 = vmatprep.subr.mxu0 0.0
          %317 = vmatpush2.msra.mxu0 0.0
          %318 = vmatprep.subr.mxu0 0.0
          %319 = vmatpush2.msra.mxu0 0.0
          %320 = vmatprep.subr.mxu0 0.0
          %321 = vmatpush2.msra.mxu0 0.0
          %322 = vmatprep.subr.mxu0 0.0
          %323 = vmatpush2.msra.mxu0 0.0
          %324 = vmatprep.subr.mxu0 0.0
          %325 = vmatpush2.msra.mxu0 0.0
          %326 = vmatprep.subr.mxu0 0.0
          %327 = vmatpush2.msra.mxu0 0.0
          %328 = vmatprep.subr.mxu0 0.0
          %329 = vmatpush2.msra.mxu0 0.0
          %330 = vmatprep.subr.mxu0 0.0
          %331 = vmatpush2.msra.mxu0 0.0
          %332 = vmatprep.subr.mxu0 0.0
          %333 = vmatpush2.msra.mxu0 0.0
          %334 = vmatprep.subr.mxu0 0.0
          %335 = vmatpush2.msra.mxu0 0.0
          %336 = vmatprep.subr.mxu0 0.0
          %337 = vmatpush2.msra.mxu0 0.0
          %338 = vmatprep.mubr.f32.mxu0 0.0
          %339 = vmatmul.mubr.f32.gmra.mxu0 %v242
          %v340 = vpop.f32.mrf.mxu0
          %v341 = vadd.f32 0.0, %v340
          %v342 = vpop.f32.mrf.mxu0
          %343 = vmatprep.mubr.f32.mxu0 0.0
          %344 = vmatmul.mubr.f32.gmra.mxu0 %v243
          %v345 = vpop.f32.mrf.mxu0
          %v346 = vadd.f32 0.0, %v345
          %v347 = vpop.f32.mrf.mxu0
          %348 = vmatprep.mubr.f32.mxu0 0.0
          %349 = vmatmul.mubr.f32.gmra.mxu0 %v244
          %v350 = vpop.f32.mrf.mxu0
          %v351 = vadd.f32 0.0, %v350
          %v352 = vpop.f32.mrf.mxu0
          %353 = vmatprep.mubr.f32.mxu0 0.0
          %354 = vmatmul.mubr.f32.gmra.mxu0 %v245
          %v355 = vpop.f32.mrf.mxu0
          %v356 = vadd.f32 0.0, %v355
          %v357 = vpop.f32.mrf.mxu0
          %358 = vmatprep.mubr.f32.mxu0 0.0
          %359 = vmatmul.mubr.f32.gmra.mxu0 %v246
          %v360 = vpop.f32.mrf.mxu0
          %v361 = vadd.f32 0.0, %v360
          %v362 = vpop.f32.mrf.mxu0
          %363 = vmatprep.mubr.f32.mxu0 0.0
          %364 = vmatmul.mubr.f32.gmra.mxu0 %v247
          %v365 = vpop.f32.mrf.mxu0
          %v366 = vadd.f32 0.0, %v365
          %v367 = vpop.f32.mrf.mxu0
          %368 = vmatprep.mubr.f32.mxu0 0.0
          %369 = vmatmul.mubr.f32.gmra.mxu0 %v248
          %v370 = vpop.f32.mrf.mxu0
          %v371 = vadd.f32 0.0, %v370
          %v372 = vpop.f32.mrf.mxu0
          %373 = vmatprep.mubr.f32.mxu0 0.0
          %374 = vmatmul.mubr.f32.gmra.mxu0 %v249
          %v375 = vpop.f32.mrf.mxu0
          %v376 = vadd.f32 0.0, %v375
          %v377 = vpop.f32.mrf.mxu0
          %378 = vmatprep.mubr.f32.mxu0 0.0
          %379 = vmatmul.mubr.f32.gmra.mxu0 %v250
          %v380 = vpop.f32.mrf.mxu0
          %v381 = vadd.f32 0.0, %v380
          %v382 = vpop.f32.mrf.mxu0
          %383 = vmatprep.mubr.f32.mxu0 0.0
          %384 = vmatmul.mubr.f32.gmra.mxu0 %v251
          %v385 = vpop.f32.mrf.mxu0
          %v386 = vadd.f32 0.0, %v385
          %v387 = vpop.f32.mrf.mxu0
          %388 = vmatprep.mubr.f32.mxu0 0.0
          %389 = vmatmul.mubr.f32.gmra.mxu0 %v252
          %v390 = vpop.f32.mrf.mxu0
          %v391 = vadd.f32 0.0, %v390
          %v392 = vpop.f32.mrf.mxu0
          %393 = vmatprep.mubr.f32.mxu0 0.0
          %394 = vmatmul.mubr.f32.gmra.mxu0 %v253
          %v395 = vpop.f32.mrf.mxu0
          %v396 = vadd.f32 0.0, %v395
          %v397 = vpop.f32.mrf.mxu0
          %398 = vmatprep.mubr.f32.mxu0 0.0
          %399 = vmatmul.mubr.f32.gmra.mxu0 %v254
          %v400 = vpop.f32.mrf.mxu0
          %v401 = vadd.f32 0.0, %v400
          %v402 = vpop.f32.mrf.mxu0
          %403 = vmatprep.mubr.f32.mxu0 0.0
          %404 = vmatmul.mubr.f32.gmra.mxu0 %v255
          %v405 = vpop.f32.mrf.mxu0
          %v406 = vadd.f32 0.0, %v405
          %v407 = vpop.f32.mrf.mxu0
          %408 = vmatprep.mubr.f32.mxu0 0.0
          %409 = vmatmul.mubr.f32.gmra.mxu0 %v256
          %v410 = vpop.f32.mrf.mxu0
          %v411 = vadd.f32 0.0, %v410
          %v412 = vpop.f32.mrf.mxu0
          %413 = vmatprep.mubr.f32.mxu0 0.0
          %414 = vmatmul.mubr.f32.gmra.mxu0 %v257
          %v415 = vpop.f32.mrf.mxu0
          %v416 = vadd.f32 0.0, %v415
          %v417 = vpop.f32.mrf.mxu0
          %418 = vmatprep.mubr.f32.mxu0 0.0
          %419 = vmatmul.mubr.f32.gmra.mxu0 %v258
          %v420 = vpop.f32.mrf.mxu0
          %v421 = vadd.f32 0.0, %v420
          %v422 = vpop.f32.mrf.mxu0
          %423 = vmatprep.mubr.f32.mxu0 0.0
          %424 = vmatmul.mubr.f32.gmra.mxu0 %v259
          %v425 = vpop.f32.mrf.mxu0
          %v426 = vadd.f32 0.0, %v425
          %v427 = vpop.f32.mrf.mxu0
          %428 = vmatprep.mubr.f32.mxu0 0.0
          %429 = vmatmul.mubr.f32.gmra.mxu0 %v260
          %v430 = vpop.f32.mrf.mxu0
          %v431 = vadd.f32 0.0, %v430
          %v432 = vpop.f32.mrf.mxu0
          %433 = vmatprep.mubr.f32.mxu0 0.0
          %434 = vmatmul.mubr.f32.gmra.mxu0 %v261
          %v435 = vpop.f32.mrf.mxu0
          %v436 = vadd.f32 0.0, %v435
          %v437 = vpop.f32.mrf.mxu0
          %438 = vmatprep.mubr.f32.mxu0 0.0
          %439 = vmatmul.mubr.f32.gmra.mxu0 %v262
          %v440 = vpop.f32.mrf.mxu0
          %v441 = vadd.f32 0.0, %v440
          %v442 = vpop.f32.mrf.mxu0
          %443 = vmatprep.mubr.f32.mxu0 0.0
          %444 = vmatmul.mubr.f32.gmra.mxu0 %v263
          %v445 = vpop.f32.mrf.mxu0
          %v446 = vadd.f32 0.0, %v445
          %v447 = vpop.f32.mrf.mxu0
          %448 = vmatprep.mubr.f32.mxu0 0.0
          %449 = vmatmul.mubr.f32.gmra.mxu0 %v264
          %v450 = vpop.f32.mrf.mxu0
          %v451 = vadd.f32 0.0, %v450
          %v452 = vpop.f32.mrf.mxu0
          %453 = vmatprep.mubr.f32.mxu0 0.0
          %454 = vmatmul.mubr.f32.gmra.mxu0 %v265
          %v455 = vpop.f32.mrf.mxu0
          %v456 = vadd.f32 0.0, %v455
          %v457 = vpop.f32.mrf.mxu0
          %458 = vmatprep.mubr.f32.mxu0 0.0
          %459 = vmatmul.mubr.f32.gmra.mxu0 %v266
          %v460 = vpop.f32.mrf.mxu0
          %v461 = vadd.f32 0.0, %v460
          %v462 = vpop.f32.mrf.mxu0
          %463 = vmatprep.mubr.f32.mxu0 0.0
          %464 = vmatmul.mubr.f32.gmra.mxu0 %v267
          %v465 = vpop.f32.mrf.mxu0
          %v466 = vadd.f32 0.0, %v465
          %v467 = vpop.f32.mrf.mxu0
          %468 = vmatprep.mubr.f32.mxu0 0.0
          %469 = vmatmul.mubr.f32.gmra.mxu0 %v268
          %v470 = vpop.f32.mrf.mxu0
          %v471 = vadd.f32 0.0, %v470
          %v472 = vpop.f32.mrf.mxu0
          %473 = vmatprep.mubr.f32.mxu0 0.0
          %474 = vmatmul.mubr.f32.gmra.mxu0 %v269
          %v475 = vpop.f32.mrf.mxu0
          %v476 = vadd.f32 0.0, %v475
          %v477 = vpop.f32.mrf.mxu0
          %478 = vmatprep.mubr.f32.mxu0 0.0
          %479 = vmatmul.mubr.f32.gmra.mxu0 %v270
          %v480 = vpop.f32.mrf.mxu0
          %v481 = vadd.f32 0.0, %v480
          %v482 = vpop.f32.mrf.mxu0
          %483 = vmatprep.mubr.f32.mxu0 0.0
          %484 = vmatmul.mubr.f32.gmra.mxu0 %v271
          %v485 = vpop.f32.mrf.mxu0
          %v486 = vadd.f32 0.0, %v485
          %v487 = vpop.f32.mrf.mxu0
          %488 = vmatprep.mubr.f32.mxu0 0.0
          %489 = vmatmul.mubr.f32.gmra.mxu0 %v272
          %v490 = vpop.f32.mrf.mxu0
          %v491 = vadd.f32 0.0, %v490
          %v492 = vpop.f32.mrf.mxu0
          %493 = vmatprep.mubr.f32.mxu0 0.0
          %494 = vmatmul.mubr.f32.gmra.mxu0 %v273
          %v495 = vpop.f32.mrf.mxu0
          %v496 = vadd.f32 0.0, %v495
          %v497 = vpop.f32.mrf.mxu0
          %498 = vdwg.mxu0
          %v499 = vld [vmem:[#allocation5] sm:$0x1]
          %v500 = vadd.f32 %v341, %v346
          %v501 = vadd.f32 %v500, %v351
          %v502 = vadd.f32 %v501, %v356
          %v503 = vadd.f32 %v502, %v361
          %v504 = vadd.f32 %v503, %v366
          %v505 = vadd.f32 %v504, %v371
          %v506 = vadd.f32 %v505, %v376
          %v507 = vadd.f32 %v506, %v381
          %v508 = vadd.f32 %v507, %v386
          %v509 = vadd.f32 %v508, %v391
          %v510 = vadd.f32 %v509, %v396
          %v511 = vadd.f32 %v510, %v401
          %v512 = vadd.f32 %v511, %v406
          %v513 = vadd.f32 %v512, %v411
          %v514 = vadd.f32 %v513, %v416
          %v515 = vadd.f32 %v514, %v421
          %v516 = vadd.f32 %v515, %v426
          %v517 = vadd.f32 %v516, %v431
          %v518 = vadd.f32 %v517, %v436
          %v519 = vadd.f32 %v518, %v441
          %v520 = vadd.f32 %v519, %v446
          %v521 = vadd.f32 %v520, %v451
          %v522 = vadd.f32 %v521, %v456
          %v523 = vadd.f32 %v522, %v461
          %v524 = vadd.f32 %v523, %v466
          %v525 = vadd.f32 %v524, %v471
          %v526 = vadd.f32 %v525, %v476
          %v527 = vadd.f32 %v526, %v481
          %v528 = vadd.f32 %v527, %v486
          %v529 = vadd.f32 %v528, %v491
          %v530 = vadd.f32 %v529, %v496
          %v531 = vrot.slane %v530, 4
          %v532 = vadd.f32 %v530, %v531
          %v533 = vrot.slane %v532, 2
          %v534 = vadd.f32 %v532, %v533
          %v535 = vrot.slane %v534, 1
          %v536 = vadd.f32 %v534, %v535
          %v537 = vadd.f32 %v499, %v536
          %538 = vst [vmem:[#allocation5] sm:$0x1] %v537
          %v539 = vld [vmem:[#allocation6] sm:$0x1]
          %v540 = vmul.f32 %v341, %v341
          %v541 = vmul.f32 %v346, %v346
          %v542 = vmul.f32 %v351, %v351
          %v543 = vmul.f32 %v356, %v356
          %v544 = vmul.f32 %v361, %v361
          %v545 = vmul.f32 %v366, %v366
          %v546 = vmul.f32 %v371, %v371
          %v547 = vmul.f32 %v376, %v376
          %v548 = vmul.f32 %v381, %v381
          %v549 = vmul.f32 %v386, %v386
          %v550 = vmul.f32 %v391, %v391
          %v551 = vmul.f32 %v396, %v396
          %v552 = vmul.f32 %v401, %v401
          %v553 = vmul.f32 %v406, %v406
          %v554 = vmul.f32 %v411, %v411
          %v555 = vmul.f32 %v416, %v416
          %v556 = vmul.f32 %v421, %v421
          %v557 = vmul.f32 %v426, %v426
          %v558 = vmul.f32 %v431, %v431
          %v559 = vmul.f32 %v436, %v436
          %v560 = vmul.f32 %v441, %v441
          %v561 = vmul.f32 %v446, %v446
          %v562 = vmul.f32 %v451, %v451
          %v563 = vmul.f32 %v456, %v456
          %v564 = vmul.f32 %v461, %v461
          %v565 = vmul.f32 %v466, %v466
          %v566 = vmul.f32 %v471, %v471
          %v567 = vmul.f32 %v476, %v476
          %v568 = vmul.f32 %v481, %v481
          %v569 = vmul.f32 %v486, %v486
          %v570 = vmul.f32 %v491, %v491
          %v571 = vmul.f32 %v496, %v496
          %v572 = vadd.f32 %v540, %v541
          %v573 = vadd.f32 %v572, %v542
          %v574 = vadd.f32 %v573, %v543
          %v575 = vadd.f32 %v574, %v544
          %v576 = vadd.f32 %v575, %v545
          %v577 = vadd.f32 %v576, %v546
          %v578 = vadd.f32 %v577, %v547
          %v579 = vadd.f32 %v578, %v548
          %v580 = vadd.f32 %v579, %v549
          %v581 = vadd.f32 %v580, %v550
          %v582 = vadd.f32 %v581, %v551
          %v583 = vadd.f32 %v582, %v552
          %v584 = vadd.f32 %v583, %v553
          %v585 = vadd.f32 %v584, %v554
          %v586 = vadd.f32 %v585, %v555
          %v587 = vadd.f32 %v586, %v556
          %v588 = vadd.f32 %v587, %v557
          %v589 = vadd.f32 %v588, %v558
          %v590 = vadd.f32 %v589, %v559
          %v591 = vadd.f32 %v590, %v560
          %v592 = vadd.f32 %v591, %v561
          %v593 = vadd.f32 %v592, %v562
          %v594 = vadd.f32 %v593, %v563
          %v595 = vadd.f32 %v594, %v564
          %v596 = vadd.f32 %v595, %v565
          %v597 = vadd.f32 %v596, %v566
          %v598 = vadd.f32 %v597, %v567
          %v599 = vadd.f32 %v598, %v568
          %v600 = vadd.f32 %v599, %v569
          %v601 = vadd.f32 %v600, %v570
          %v602 = vadd.f32 %v601, %v571
          %v603 = vrot.slane %v602, 4
          %v604 = vadd.f32 %v602, %v603
          %v605 = vrot.slane %v604, 2
          %v606 = vadd.f32 %v604, %v605
          %v607 = vrot.slane %v606, 1
          %v608 = vadd.f32 %v606, %v607
          %v609 = vadd.f32 %v539, %v608
          %610 = vst [vmem:[#allocation6] sm:$0x1] %v609
          %v611 = vld [vmem:[#allocation5] sm:$0x1]
          %v612 = vmul.f32 %v611, 0.00390625
          %v613 = vld [vmem:[#allocation6] sm:$0x1]
          %v614 = vmul.f32 %v613, 0.00390625
          %v615 = vmul.f32 %v612, %v612
          %v616 = vsub.f32 %v614, %v615
          %v617 = vadd.f32 %v616, 1e-05
          %v618 = vrsqrt.pop %v617
          %v619 = vld [vmem:[%s201] sm:$0x1]
          %v620 = vmul.f32 %v619, %v618
          %v621 = vld [vmem:[%s170] sm:$0x1]
          %v622 = vmul.f32 %v612, %v620
          %v623 = vsub.f32 %v621, %v622
          %624 = vst [vmem:[#allocation4] sm:$0x1] %v623
          %v625 = vld [vmem:[%s162] sm:$0xff]
          %v626 = vld [vmem:[%s162 + $0x8] sm:$0xff]
          %v627 = vld [vmem:[%s162 + $0x10] sm:$0xff]
          %v628 = vld [vmem:[%s162 + $0x18] sm:$0xff]
          %v629 = vld [vmem:[%s162 + $0x20] sm:$0xff]
          %v630 = vld [vmem:[%s162 + $0x28] sm:$0xff]
          %v631 = vld [vmem:[%s162 + $0x30] sm:$0xff]
          %v632 = vld [vmem:[%s162 + $0x38] sm:$0xff]
          %v633 = vld [vmem:[%s162 + $0x40] sm:$0xff]
          %v634 = vld [vmem:[%s162 + $0x48] sm:$0xff]
          %v635 = vld [vmem:[%s162 + $0x50] sm:$0xff]
          %v636 = vld [vmem:[%s162 + $0x58] sm:$0xff]
          %v637 = vld [vmem:[%s162 + $0x60] sm:$0xff]
          %v638 = vld [vmem:[%s162 + $0x68] sm:$0xff]
          %v639 = vld [vmem:[%s162 + $0x70] sm:$0xff]
          %v640 = vld [vmem:[%s162 + $0x78] sm:$0xff]
          %v642 = vlaneseq
          %v643 = vshrl.u32 %v642, 7
          %v644 = vsub.s32 0, %v643
          %v645 = vrot.slane %v620, %v644
          %v647 = vmul.f32 %v625, %v645
          %v648 = vmul.f32 %v626, %v645
          %v649 = vmul.f32 %v627, %v645
          %v650 = vmul.f32 %v628, %v645
          %v651 = vmul.f32 %v629, %v645
          %v652 = vmul.f32 %v630, %v645
          %v653 = vmul.f32 %v631, %v645
          %v654 = vmul.f32 %v632, %v645
          %v655 = vmul.f32 %v633, %v645
          %v656 = vmul.f32 %v634, %v645
          %v657 = vmul.f32 %v635, %v645
          %v658 = vmul.f32 %v636, %v645
          %v659 = vmul.f32 %v637, %v645
          %v660 = vmul.f32 %v638, %v645
          %v661 = vmul.f32 %v639, %v645
          %v662 = vmul.f32 %v640, %v645
          %663 = vst [vmem:[#allocation3] sm:$0xff] %v647
          %664 = vst [vmem:[#allocation3 + $0x8] sm:$0xff] %v648
          %665 = vst [vmem:[#allocation3 + $0x10] sm:$0xff] %v649
          %666 = vst [vmem:[#allocation3 + $0x18] sm:$0xff] %v650
          %667 = vst [vmem:[#allocation3 + $0x20] sm:$0xff] %v651
          %668 = vst [vmem:[#allocation3 + $0x28] sm:$0xff] %v652
          %669 = vst [vmem:[#allocation3 + $0x30] sm:$0xff] %v653
          %670 = vst [vmem:[#allocation3 + $0x38] sm:$0xff] %v654
          %671 = vst [vmem:[#allocation3 + $0x40] sm:$0xff] %v655
          %672 = vst [vmem:[#allocation3 + $0x48] sm:$0xff] %v656
          %673 = vst [vmem:[#allocation3 + $0x50] sm:$0xff] %v657
          %674 = vst [vmem:[#allocation3 + $0x58] sm:$0xff] %v658
          %675 = vst [vmem:[#allocation3 + $0x60] sm:$0xff] %v659
          %676 = vst [vmem:[#allocation3 + $0x68] sm:$0xff] %v660
          %677 = vst [vmem:[#allocation3 + $0x70] sm:$0xff] %v661
          %678 = vst [vmem:[#allocation3 + $0x78] sm:$0xff] %v662
        $region44: #{tpu_custom_call.1} parent=31 // pred_fallthru
          _
        %p679 = scmp.ge.s32.totalorder %s21, 1
        %p680 = scmp.lt.s32.totalorder %s21, 3
        %p681 = pnand %p679, %p680
        %p682 = pneg %p681
        // Predicated region
        $region49: #{tpu_custom_call.1} parent=31 // pred_check
          _
        $region50: #{tpu_custom_call.1} parent=31 // pred_check_branch
          %684 = sbr.rel (%p681) target = $region52
        $region51: #{tpu_custom_call.1} parent=31 // pred_region
          %685 = vst [vmem:[#allocation5] sm:$0x1] 0.0
          %686 = vst [vmem:[#allocation6] sm:$0x1] 0.0
          %v687 = vld [vmem:[#allocation3] sm:$0xff]
          %v688 = vld [vmem:[#allocation3 + $0x8] sm:$0xff]
          %v689 = vld [vmem:[#allocation3 + $0x10] sm:$0xff]
          %v690 = vld [vmem:[#allocation3 + $0x18] sm:$0xff]
          %v691 = vld [vmem:[#allocation3 + $0x20] sm:$0xff]
          %v692 = vld [vmem:[#allocation3 + $0x28] sm:$0xff]
          %v693 = vld [vmem:[#allocation3 + $0x30] sm:$0xff]
          %v694 = vld [vmem:[#allocation3 + $0x38] sm:$0xff]
          %v695 = vld [vmem:[#allocation3 + $0x40] sm:$0xff]
          %v696 = vld [vmem:[#allocation3 + $0x48] sm:$0xff]
          %v697 = vld [vmem:[#allocation3 + $0x50] sm:$0xff]
          %v698 = vld [vmem:[#allocation3 + $0x58] sm:$0xff]
          %v699 = vld [vmem:[#allocation3 + $0x60] sm:$0xff]
          %v700 = vld [vmem:[#allocation3 + $0x68] sm:$0xff]
          %v701 = vld [vmem:[#allocation3 + $0x70] sm:$0xff]
          %v702 = vld [vmem:[#allocation3 + $0x78] sm:$0xff]
          %v703 = vld [vmem:[#allocation4] sm:$0x1]
          %v704 = vld [vmem:[%s162] sm:$0xff]
          %v705 = vld [vmem:[%s162 + $0x8] sm:$0xff]
          %v706 = vld [vmem:[%s162 + $0x10] sm:$0xff]
          %v707 = vld [vmem:[%s162 + $0x18] sm:$0xff]
          %v708 = vld [vmem:[%s162 + $0x20] sm:$0xff]
          %v709 = vld [vmem:[%s162 + $0x28] sm:$0xff]
          %v710 = vld [vmem:[%s162 + $0x30] sm:$0xff]
          %v711 = vld [vmem:[%s162 + $0x38] sm:$0xff]
          %v712 = vld [vmem:[%s162 + $0x40] sm:$0xff]
          %v713 = vld [vmem:[%s162 + $0x48] sm:$0xff]
          %v714 = vld [vmem:[%s162 + $0x50] sm:$0xff]
          %v715 = vld [vmem:[%s162 + $0x58] sm:$0xff]
          %v716 = vld [vmem:[%s162 + $0x60] sm:$0xff]
          %v717 = vld [vmem:[%s162 + $0x68] sm:$0xff]
          %v718 = vld [vmem:[%s162 + $0x70] sm:$0xff]
          %v719 = vld [vmem:[%s162 + $0x78] sm:$0xff]
          %v720 = vld [vmem:[#allocation2] sm:$0xff]
          %v721 = vld [vmem:[#allocation2 + $0x8] sm:$0xff]
          %v722 = vld [vmem:[#allocation2 + $0x10] sm:$0xff]
          %v723 = vld [vmem:[#allocation2 + $0x18] sm:$0xff]
          %v724 = vld [vmem:[#allocation2 + $0x20] sm:$0xff]
          %v725 = vld [vmem:[#allocation2 + $0x28] sm:$0xff]
          %v726 = vld [vmem:[#allocation2 + $0x30] sm:$0xff]
          %v727 = vld [vmem:[#allocation2 + $0x38] sm:$0xff]
          %v728 = vld [vmem:[#allocation2 + $0x40] sm:$0xff]
          %v729 = vld [vmem:[#allocation2 + $0x48] sm:$0xff]
          %v730 = vld [vmem:[#allocation2 + $0x50] sm:$0xff]
          %v731 = vld [vmem:[#allocation2 + $0x58] sm:$0xff]
          %v732 = vld [vmem:[#allocation2 + $0x60] sm:$0xff]
          %v733 = vld [vmem:[#allocation2 + $0x68] sm:$0xff]
          %v734 = vld [vmem:[#allocation2 + $0x70] sm:$0xff]
          %v735 = vld [vmem:[#allocation2 + $0x78] sm:$0xff]
          %v736 = vld [vmem:[#allocation2 + $0x80] sm:$0xff]
          %v737 = vld [vmem:[#allocation2 + $0x88] sm:$0xff]
          %v738 = vld [vmem:[#allocation2 + $0x90] sm:$0xff]
          %v739 = vld [vmem:[#allocation2 + $0x98] sm:$0xff]
          %v740 = vld [vmem:[#allocation2 + $0xa0] sm:$0xff]
          %v741 = vld [vmem:[#allocation2 + $0xa8] sm:$0xff]
          %v742 = vld [vmem:[#allocation2 + $0xb0] sm:$0xff]
          %v743 = vld [vmem:[#allocation2 + $0xb8] sm:$0xff]
          %v744 = vld [vmem:[#allocation2 + $0xc0] sm:$0xff]
          %v745 = vld [vmem:[#allocation2 + $0xc8] sm:$0xff]
          %v746 = vld [vmem:[#allocation2 + $0xd0] sm:$0xff]
          %v747 = vld [vmem:[#allocation2 + $0xd8] sm:$0xff]
          %v748 = vld [vmem:[#allocation2 + $0xe0] sm:$0xff]
          %v749 = vld [vmem:[#allocation2 + $0xe8] sm:$0xff]
          %v750 = vld [vmem:[#allocation2 + $0xf0] sm:$0xff]
          %v751 = vld [vmem:[#allocation2 + $0xf8] sm:$0xff]
          %v753 = vlaneseq
          %v754 = vshrl.u32 %v753, 7
          %v755 = vsub.s32 0, %v754
          %v756 = vrot.slane %v703, %v755
          %758 = vmatprep.subr.mxu0 0.0
          %759 = vmatpush1.msra.mxu0 %v702
          %760 = vmatprep.subr.mxu0 0.0
          %761 = vmatpush1.msra.mxu0 %v701
          %762 = vmatprep.subr.mxu0 0.0
          %763 = vmatpush1.msra.mxu0 %v700
          %764 = vmatprep.subr.mxu0 0.0
          %765 = vmatpush1.msra.mxu0 %v699
          %766 = vmatprep.subr.mxu0 0.0
          %767 = vmatpush1.msra.mxu0 %v698
          %768 = vmatprep.subr.mxu0 0.0
          %769 = vmatpush1.msra.mxu0 %v697
          %770 = vmatprep.subr.mxu0 0.0
          %771 = vmatpush1.msra.mxu0 %v696
          %772 = vmatprep.subr.mxu0 0.0
          %773 = vmatpush1.msra.mxu0 %v695
          %774 = vmatprep.subr.mxu0 0.0
          %775 = vmatpush1.msra.mxu0 %v694
          %776 = vmatprep.subr.mxu0 0.0
          %777 = vmatpush1.msra.mxu0 %v693
          %778 = vmatprep.subr.mxu0 0.0
          %779 = vmatpush1.msra.mxu0 %v692
          %780 = vmatprep.subr.mxu0 0.0
          %781 = vmatpush1.msra.mxu0 %v691
          %782 = vmatprep.subr.mxu0 0.0
          %783 = vmatpush1.msra.mxu0 %v690
          %784 = vmatprep.subr.mxu0 0.0
          %785 = vmatpush1.msra.mxu0 %v689
          %786 = vmatprep.subr.mxu0 0.0
          %787 = vmatpush1.msra.mxu0 %v688
          %788 = vmatprep.subr.mxu0 0.0
          %789 = vmatpush1.msra.mxu0 %v687
          %790 = vmatprep.subr.mxu0 0.0
          %791 = vmatpush2.msra.mxu0 0.0
          %792 = vmatprep.subr.mxu0 0.0
          %793 = vmatpush2.msra.mxu0 0.0
          %794 = vmatprep.subr.mxu0 0.0
          %795 = vmatpush2.msra.mxu0 0.0
          %796 = vmatprep.subr.mxu0 0.0
          %797 = vmatpush2.msra.mxu0 0.0
          %798 = vmatprep.subr.mxu0 0.0
          %799 = vmatpush2.msra.mxu0 0.0
          %800 = vmatprep.subr.mxu0 0.0
          %801 = vmatpush2.msra.mxu0 0.0
          %802 = vmatprep.subr.mxu0 0.0
          %803 = vmatpush2.msra.mxu0 0.0
          %804 = vmatprep.subr.mxu0 0.0
          %805 = vmatpush2.msra.mxu0 0.0
          %806 = vmatprep.subr.mxu0 0.0
          %807 = vmatpush2.msra.mxu0 0.0
          %808 = vmatprep.subr.mxu0 0.0
          %809 = vmatpush2.msra.mxu0 0.0
          %810 = vmatprep.subr.mxu0 0.0
          %811 = vmatpush2.msra.mxu0 0.0
          %812 = vmatprep.subr.mxu0 0.0
          %813 = vmatpush2.msra.mxu0 0.0
          %814 = vmatprep.subr.mxu0 0.0
          %815 = vmatpush2.msra.mxu0 0.0
          %816 = vmatprep.subr.mxu0 0.0
          %817 = vmatpush2.msra.mxu0 0.0
          %818 = vmatprep.subr.mxu0 0.0
          %819 = vmatpush2.msra.mxu0 0.0
          %820 = vmatprep.subr.mxu0 0.0
          %821 = vmatpush2.msra.mxu0 0.0
          %822 = vmatprep.mubr.f32.mxu0 0.0
          %823 = vmatmul.mubr.f32.gmra.mxu0 %v720
          %v824 = vpop.f32.mrf.mxu0
          %v825 = vadd.f32 %v756, %v824
          %v826 = vpop.f32.mrf.mxu0
          %827 = vmatprep.mubr.f32.mxu0 0.0
          %828 = vmatmul.mubr.f32.gmra.mxu0 %v721
          %v829 = vpop.f32.mrf.mxu0
          %v830 = vadd.f32 %v756, %v829
          %v831 = vpop.f32.mrf.mxu0
          %832 = vmatprep.mubr.f32.mxu0 0.0
          %833 = vmatmul.mubr.f32.gmra.mxu0 %v722
          %v834 = vpop.f32.mrf.mxu0
          %v835 = vadd.f32 %v756, %v834
          %v836 = vpop.f32.mrf.mxu0
          %837 = vmatprep.mubr.f32.mxu0 0.0
          %838 = vmatmul.mubr.f32.gmra.mxu0 %v723
          %v839 = vpop.f32.mrf.mxu0
          %v840 = vadd.f32 %v756, %v839
          %v841 = vpop.f32.mrf.mxu0
          %842 = vmatprep.mubr.f32.mxu0 0.0
          %843 = vmatmul.mubr.f32.gmra.mxu0 %v724
          %v844 = vpop.f32.mrf.mxu0
          %v845 = vadd.f32 %v756, %v844
          %v846 = vpop.f32.mrf.mxu0
          %847 = vmatprep.mubr.f32.mxu0 0.0
          %848 = vmatmul.mubr.f32.gmra.mxu0 %v725
          %v849 = vpop.f32.mrf.mxu0
          %v850 = vadd.f32 %v756, %v849
          %v851 = vpop.f32.mrf.mxu0
          %852 = vmatprep.mubr.f32.mxu0 0.0
          %853 = vmatmul.mubr.f32.gmra.mxu0 %v726
          %v854 = vpop.f32.mrf.mxu0
          %v855 = vadd.f32 %v756, %v854
          %v856 = vpop.f32.mrf.mxu0
          %857 = vmatprep.mubr.f32.mxu0 0.0
          %858 = vmatmul.mubr.f32.gmra.mxu0 %v727
          %v859 = vpop.f32.mrf.mxu0
          %v860 = vadd.f32 %v756, %v859
          %v861 = vpop.f32.mrf.mxu0
          %862 = vmatprep.mubr.f32.mxu0 0.0
          %863 = vmatmul.mubr.f32.gmra.mxu0 %v728
          %v864 = vpop.f32.mrf.mxu0
          %v865 = vadd.f32 %v756, %v864
          %v866 = vpop.f32.mrf.mxu0
          %867 = vmatprep.mubr.f32.mxu0 0.0
          %868 = vmatmul.mubr.f32.gmra.mxu0 %v729
          %v869 = vpop.f32.mrf.mxu0
          %v870 = vadd.f32 %v756, %v869
          %v871 = vpop.f32.mrf.mxu0
          %872 = vmatprep.mubr.f32.mxu0 0.0
          %873 = vmatmul.mubr.f32.gmra.mxu0 %v730
          %v874 = vpop.f32.mrf.mxu0
          %v875 = vadd.f32 %v756, %v874
          %v876 = vpop.f32.mrf.mxu0
          %877 = vmatprep.mubr.f32.mxu0 0.0
          %878 = vmatmul.mubr.f32.gmra.mxu0 %v731
          %v879 = vpop.f32.mrf.mxu0
          %v880 = vadd.f32 %v756, %v879
          %v881 = vpop.f32.mrf.mxu0
          %882 = vmatprep.mubr.f32.mxu0 0.0
          %883 = vmatmul.mubr.f32.gmra.mxu0 %v732
          %v884 = vpop.f32.mrf.mxu0
          %v885 = vadd.f32 %v756, %v884
          %v886 = vpop.f32.mrf.mxu0
          %887 = vmatprep.mubr.f32.mxu0 0.0
          %888 = vmatmul.mubr.f32.gmra.mxu0 %v733
          %v889 = vpop.f32.mrf.mxu0
          %v890 = vadd.f32 %v756, %v889
          %v891 = vpop.f32.mrf.mxu0
          %892 = vmatprep.mubr.f32.mxu0 0.0
          %893 = vmatmul.mubr.f32.gmra.mxu0 %v734
          %v894 = vpop.f32.mrf.mxu0
          %v895 = vadd.f32 %v756, %v894
          %v896 = vpop.f32.mrf.mxu0
          %897 = vmatprep.mubr.f32.mxu0 0.0
          %898 = vmatmul.mubr.f32.gmra.mxu0 %v735
          %v899 = vpop.f32.mrf.mxu0
          %v900 = vadd.f32 %v756, %v899
          %v901 = vpop.f32.mrf.mxu0
          %902 = vmatprep.mubr.f32.mxu0 0.0
          %903 = vmatmul.mubr.f32.gmra.mxu0 %v736
          %v904 = vpop.f32.mrf.mxu0
          %v905 = vadd.f32 %v756, %v904
          %v906 = vpop.f32.mrf.mxu0
          %907 = vmatprep.mubr.f32.mxu0 0.0
          %908 = vmatmul.mubr.f32.gmra.mxu0 %v737
          %v909 = vpop.f32.mrf.mxu0
          %v910 = vadd.f32 %v756, %v909
          %v911 = vpop.f32.mrf.mxu0
          %912 = vmatprep.mubr.f32.mxu0 0.0
          %913 = vmatmul.mubr.f32.gmra.mxu0 %v738
          %v914 = vpop.f32.mrf.mxu0
          %v915 = vadd.f32 %v756, %v914
          %v916 = vpop.f32.mrf.mxu0
          %917 = vmatprep.mubr.f32.mxu0 0.0
          %918 = vmatmul.mubr.f32.gmra.mxu0 %v739
          %v919 = vpop.f32.mrf.mxu0
          %v920 = vadd.f32 %v756, %v919
          %v921 = vpop.f32.mrf.mxu0
          %922 = vmatprep.mubr.f32.mxu0 0.0
          %923 = vmatmul.mubr.f32.gmra.mxu0 %v740
          %v924 = vpop.f32.mrf.mxu0
          %v925 = vadd.f32 %v756, %v924
          %v926 = vpop.f32.mrf.mxu0
          %927 = vmatprep.mubr.f32.mxu0 0.0
          %928 = vmatmul.mubr.f32.gmra.mxu0 %v741
          %v929 = vpop.f32.mrf.mxu0
          %v930 = vadd.f32 %v756, %v929
          %v931 = vpop.f32.mrf.mxu0
          %932 = vmatprep.mubr.f32.mxu0 0.0
          %933 = vmatmul.mubr.f32.gmra.mxu0 %v742
          %v934 = vpop.f32.mrf.mxu0
          %v935 = vadd.f32 %v756, %v934
          %v936 = vpop.f32.mrf.mxu0
          %937 = vmatprep.mubr.f32.mxu0 0.0
          %938 = vmatmul.mubr.f32.gmra.mxu0 %v743
          %v939 = vpop.f32.mrf.mxu0
          %v940 = vadd.f32 %v756, %v939
          %v941 = vpop.f32.mrf.mxu0
          %942 = vmatprep.mubr.f32.mxu0 0.0
          %943 = vmatmul.mubr.f32.gmra.mxu0 %v744
          %v944 = vpop.f32.mrf.mxu0
          %v945 = vadd.f32 %v756, %v944
          %v946 = vpop.f32.mrf.mxu0
          %947 = vmatprep.mubr.f32.mxu0 0.0
          %948 = vmatmul.mubr.f32.gmra.mxu0 %v745
          %v949 = vpop.f32.mrf.mxu0
          %v950 = vadd.f32 %v756, %v949
          %v951 = vpop.f32.mrf.mxu0
          %952 = vmatprep.mubr.f32.mxu0 0.0
          %953 = vmatmul.mubr.f32.gmra.mxu0 %v746
          %v954 = vpop.f32.mrf.mxu0
          %v955 = vadd.f32 %v756, %v954
          %v956 = vpop.f32.mrf.mxu0
          %957 = vmatprep.mubr.f32.mxu0 0.0
          %958 = vmatmul.mubr.f32.gmra.mxu0 %v747
          %v959 = vpop.f32.mrf.mxu0
          %v960 = vadd.f32 %v756, %v959
          %v961 = vpop.f32.mrf.mxu0
          %962 = vmatprep.mubr.f32.mxu0 0.0
          %963 = vmatmul.mubr.f32.gmra.mxu0 %v748
          %v964 = vpop.f32.mrf.mxu0
          %v965 = vadd.f32 %v756, %v964
          %v966 = vpop.f32.mrf.mxu0
          %967 = vmatprep.mubr.f32.mxu0 0.0
          %968 = vmatmul.mubr.f32.gmra.mxu0 %v749
          %v969 = vpop.f32.mrf.mxu0
          %v970 = vadd.f32 %v756, %v969
          %v971 = vpop.f32.mrf.mxu0
          %972 = vmatprep.mubr.f32.mxu0 0.0
          %973 = vmatmul.mubr.f32.gmra.mxu0 %v750
          %v974 = vpop.f32.mrf.mxu0
          %v975 = vadd.f32 %v756, %v974
          %v976 = vpop.f32.mrf.mxu0
          %977 = vmatprep.mubr.f32.mxu0 0.0
          %978 = vmatmul.mubr.f32.gmra.mxu0 %v751
          %v979 = vpop.f32.mrf.mxu0
          %v980 = vadd.f32 %v756, %v979
          %v981 = vpop.f32.mrf.mxu0
          %982 = vdwg.mxu0
          %v983 = vmax.f32 %v825, 0.0
          %v984 = vmax.f32 %v830, 0.0
          %v985 = vmax.f32 %v835, 0.0
          %v986 = vmax.f32 %v840, 0.0
          %v987 = vmax.f32 %v845, 0.0
          %v988 = vmax.f32 %v850, 0.0
          %v989 = vmax.f32 %v855, 0.0
          %v990 = vmax.f32 %v860, 0.0
          %v991 = vmax.f32 %v865, 0.0
          %v992 = vmax.f32 %v870, 0.0
          %v993 = vmax.f32 %v875, 0.0
          %v994 = vmax.f32 %v880, 0.0
          %v995 = vmax.f32 %v885, 0.0
          %v996 = vmax.f32 %v890, 0.0
          %v997 = vmax.f32 %v895, 0.0
          %v998 = vmax.f32 %v900, 0.0
          %v999 = vmax.f32 %v905, 0.0
          %v1000 = vmax.f32 %v910, 0.0
          %v1001 = vmax.f32 %v915, 0.0
          %v1002 = vmax.f32 %v920, 0.0
          %v1003 = vmax.f32 %v925, 0.0
          %v1004 = vmax.f32 %v930, 0.0
          %v1005 = vmax.f32 %v935, 0.0
          %v1006 = vmax.f32 %v940, 0.0
          %v1007 = vmax.f32 %v945, 0.0
          %v1008 = vmax.f32 %v950, 0.0
          %v1009 = vmax.f32 %v955, 0.0
          %v1010 = vmax.f32 %v960, 0.0
          %v1011 = vmax.f32 %v965, 0.0
          %v1012 = vmax.f32 %v970, 0.0
          %v1013 = vmax.f32 %v975, 0.0
          %v1014 = vmax.f32 %v980, 0.0
          %v1015 = vmul.f32 %v983, %v983
          %v1016 = vmul.f32 %v984, %v984
          %v1017 = vmul.f32 %v985, %v985
          %v1018 = vmul.f32 %v986, %v986
          %v1019 = vmul.f32 %v987, %v987
          %v1020 = vmul.f32 %v988, %v988
          %v1021 = vmul.f32 %v989, %v989
          %v1022 = vmul.f32 %v990, %v990
          %v1023 = vmul.f32 %v991, %v991
          %v1024 = vmul.f32 %v992, %v992
          %v1025 = vmul.f32 %v993, %v993
          %v1026 = vmul.f32 %v994, %v994
          %v1027 = vmul.f32 %v995, %v995
          %v1028 = vmul.f32 %v996, %v996
          %v1029 = vmul.f32 %v997, %v997
          %v1030 = vmul.f32 %v998, %v998
          %v1031 = vmul.f32 %v999, %v999
          %v1032 = vmul.f32 %v1000, %v1000
          %v1033 = vmul.f32 %v1001, %v1001
          %v1034 = vmul.f32 %v1002, %v1002
          %v1035 = vmul.f32 %v1003, %v1003
          %v1036 = vmul.f32 %v1004, %v1004
          %v1037 = vmul.f32 %v1005, %v1005
          %v1038 = vmul.f32 %v1006, %v1006
          %v1039 = vmul.f32 %v1007, %v1007
          %v1040 = vmul.f32 %v1008, %v1008
          %v1041 = vmul.f32 %v1009, %v1009
          %v1042 = vmul.f32 %v1010, %v1010
          %v1043 = vmul.f32 %v1011, %v1011
          %v1044 = vmul.f32 %v1012, %v1012
          %v1045 = vmul.f32 %v1013, %v1013
          %v1046 = vmul.f32 %v1014, %v1014
          %1047 = vadd.xlane.f32.xlu0 %v1015
          %v1048 = vpop.xlane.xlu0 %1047
          %1049 = vadd.xlane.f32.xlu0 %v1016
          %v1050 = vpop.xlane.xlu0 %1049
          %1051 = vadd.xlane.f32.xlu0 %v1017
          %v1052 = vpop.xlane.xlu0 %1051
          %1053 = vadd.xlane.f32.xlu0 %v1018
          %v1054 = vpop.xlane.xlu0 %1053
          %1055 = vadd.xlane.f32.xlu0 %v1019
          %v1056 = vpop.xlane.xlu0 %1055
          %1057 = vadd.xlane.f32.xlu0 %v1020
          %v1058 = vpop.xlane.xlu0 %1057
          %1059 = vadd.xlane.f32.xlu0 %v1021
          %v1060 = vpop.xlane.xlu0 %1059
          %1061 = vadd.xlane.f32.xlu0 %v1022
          %v1062 = vpop.xlane.xlu0 %1061
          %1063 = vadd.xlane.f32.xlu0 %v1023
          %v1064 = vpop.xlane.xlu0 %1063
          %1065 = vadd.xlane.f32.xlu0 %v1024
          %v1066 = vpop.xlane.xlu0 %1065
          %1067 = vadd.xlane.f32.xlu0 %v1025
          %v1068 = vpop.xlane.xlu0 %1067
          %1069 = vadd.xlane.f32.xlu0 %v1026
          %v1070 = vpop.xlane.xlu0 %1069
          %1071 = vadd.xlane.f32.xlu0 %v1027
          %v1072 = vpop.xlane.xlu0 %1071
          %1073 = vadd.xlane.f32.xlu0 %v1028
          %v1074 = vpop.xlane.xlu0 %1073
          %1075 = vadd.xlane.f32.xlu0 %v1029
          %v1076 = vpop.xlane.xlu0 %1075
          %1077 = vadd.xlane.f32.xlu0 %v1030
          %v1078 = vpop.xlane.xlu0 %1077
          %1079 = vadd.xlane.f32.xlu0 %v1031
          %v1080 = vpop.xlane.xlu0 %1079
          %1081 = vadd.xlane.f32.xlu0 %v1032
          %v1082 = vpop.xlane.xlu0 %1081
          %1083 = vadd.xlane.f32.xlu0 %v1033
          %v1084 = vpop.xlane.xlu0 %1083
          %1085 = vadd.xlane.f32.xlu0 %v1034
          %v1086 = vpop.xlane.xlu0 %1085
          %1087 = vadd.xlane.f32.xlu0 %v1035
          %v1088 = vpop.xlane.xlu0 %1087
          %1089 = vadd.xlane.f32.xlu0 %v1036
          %v1090 = vpop.xlane.xlu0 %1089
          %1091 = vadd.xlane.f32.xlu0 %v1037
          %v1092 = vpop.xlane.xlu0 %1091
          %1093 = vadd.xlane.f32.xlu0 %v1038
          %v1094 = vpop.xlane.xlu0 %1093
          %1095 = vadd.xlane.f32.xlu0 %v1039
          %v1096 = vpop.xlane.xlu0 %1095
          %1097 = vadd.xlane.f32.xlu0 %v1040
          %v1098 = vpop.xlane.xlu0 %1097
          %1099 = vadd.xlane.f32.xlu0 %v1041
          %v1100 = vpop.xlane.xlu0 %1099
          %1101 = vadd.xlane.f32.xlu0 %v1042
          %v1102 = vpop.xlane.xlu0 %1101
          %1103 = vadd.xlane.f32.xlu0 %v1043
          %v1104 = vpop.xlane.xlu0 %1103
          %1105 = vadd.xlane.f32.xlu0 %v1044
          %v1106 = vpop.xlane.xlu0 %1105
          %1107 = vadd.xlane.f32.xlu0 %v1045
          %v1108 = vpop.xlane.xlu0 %1107
          %1109 = vadd.xlane.f32.xlu0 %v1046
          %v1110 = vpop.xlane.xlu0 %1109
          %v1111 = vmax.f32 %v1048, 1e-24
          %v1112 = vmax.f32 %v1050, 1e-24
          %v1113 = vmax.f32 %v1052, 1e-24
          %v1114 = vmax.f32 %v1054, 1e-24
          %v1115 = vmax.f32 %v1056, 1e-24
          %v1116 = vmax.f32 %v1058, 1e-24
          %v1117 = vmax.f32 %v1060, 1e-24
          %v1118 = vmax.f32 %v1062, 1e-24
          %v1119 = vmax.f32 %v1064, 1e-24
          %v1120 = vmax.f32 %v1066, 1e-24
          %v1121 = vmax.f32 %v1068, 1e-24
          %v1122 = vmax.f32 %v1070, 1e-24
          %v1123 = vmax.f32 %v1072, 1e-24
          %v1124 = vmax.f32 %v1074, 1e-24
          %v1125 = vmax.f32 %v1076, 1e-24
          %v1126 = vmax.f32 %v1078, 1e-24
          %v1127 = vmax.f32 %v1080, 1e-24
          %v1128 = vmax.f32 %v1082, 1e-24
          %v1129 = vmax.f32 %v1084, 1e-24
          %v1130 = vmax.f32 %v1086, 1e-24
          %v1131 = vmax.f32 %v1088, 1e-24
          %v1132 = vmax.f32 %v1090, 1e-24
          %v1133 = vmax.f32 %v1092, 1e-24
          %v1134 = vmax.f32 %v1094, 1e-24
          %v1135 = vmax.f32 %v1096, 1e-24
          %v1136 = vmax.f32 %v1098, 1e-24
          %v1137 = vmax.f32 %v1100, 1e-24
          %v1138 = vmax.f32 %v1102, 1e-24
          %v1139 = vmax.f32 %v1104, 1e-24
          %v1140 = vmax.f32 %v1106, 1e-24
          %v1141 = vmax.f32 %v1108, 1e-24
          %v1142 = vmax.f32 %v1110, 1e-24
          %v1143 = vrsqrt.pop %v1111
          %v1144 = vrsqrt.pop %v1112
          %v1145 = vrsqrt.pop %v1113
          %v1146 = vrsqrt.pop %v1114
          %v1147 = vrsqrt.pop %v1115
          %v1148 = vrsqrt.pop %v1116
          %v1149 = vrsqrt.pop %v1117
          %v1150 = vrsqrt.pop %v1118
          %v1151 = vrsqrt.pop %v1119
          %v1152 = vrsqrt.pop %v1120
          %v1153 = vrsqrt.pop %v1121
          %v1154 = vrsqrt.pop %v1122
          %v1155 = vrsqrt.pop %v1123
          %v1156 = vrsqrt.pop %v1124
          %v1157 = vrsqrt.pop %v1125
          %v1158 = vrsqrt.pop %v1126
          %v1159 = vrsqrt.pop %v1127
          %v1160 = vrsqrt.pop %v1128
          %v1161 = vrsqrt.pop %v1129
          %v1162 = vrsqrt.pop %v1130
          %v1163 = vrsqrt.pop %v1131
          %v1164 = vrsqrt.pop %v1132
          %v1165 = vrsqrt.pop %v1133
          %v1166 = vrsqrt.pop %v1134
          %v1167 = vrsqrt.pop %v1135
          %v1168 = vrsqrt.pop %v1136
          %v1169 = vrsqrt.pop %v1137
          %v1170 = vrsqrt.pop %v1138
          %v1171 = vrsqrt.pop %v1139
          %v1172 = vrsqrt.pop %v1140
          %v1173 = vrsqrt.pop %v1141
          %v1174 = vrsqrt.pop %v1142
          %v1175 = vmul.f32 %v983, %v1143
          %v1176 = vmul.f32 %v984, %v1144
          %v1177 = vmul.f32 %v985, %v1145
          %v1178 = vmul.f32 %v986, %v1146
          %v1179 = vmul.f32 %v987, %v1147
          %v1180 = vmul.f32 %v988, %v1148
          %v1181 = vmul.f32 %v989, %v1149
          %v1182 = vmul.f32 %v990, %v1150
          %v1183 = vmul.f32 %v991, %v1151
          %v1184 = vmul.f32 %v992, %v1152
          %v1185 = vmul.f32 %v993, %v1153
          %v1186 = vmul.f32 %v994, %v1154
          %v1187 = vmul.f32 %v995, %v1155
          %v1188 = vmul.f32 %v996, %v1156
          %v1189 = vmul.f32 %v997, %v1157
          %v1190 = vmul.f32 %v998, %v1158
          %v1191 = vmul.f32 %v999, %v1159
          %v1192 = vmul.f32 %v1000, %v1160
          %v1193 = vmul.f32 %v1001, %v1161
          %v1194 = vmul.f32 %v1002, %v1162
          %v1195 = vmul.f32 %v1003, %v1163
          %v1196 = vmul.f32 %v1004, %v1164
          %v1197 = vmul.f32 %v1005, %v1165
          %v1198 = vmul.f32 %v1006, %v1166
          %v1199 = vmul.f32 %v1007, %v1167
          %v1200 = vmul.f32 %v1008, %v1168
          %v1201 = vmul.f32 %v1009, %v1169
          %v1202 = vmul.f32 %v1010, %v1170
          %v1203 = vmul.f32 %v1011, %v1171
          %v1204 = vmul.f32 %v1012, %v1172
          %v1205 = vmul.f32 %v1013, %v1173
          %v1206 = vmul.f32 %v1014, %v1174
          %v1207 = vadd.f32 %v720, %v1175
          %v1208 = vadd.f32 %v721, %v1176
          %v1209 = vadd.f32 %v722, %v1177
          %v1210 = vadd.f32 %v723, %v1178
          %v1211 = vadd.f32 %v724, %v1179
          %v1212 = vadd.f32 %v725, %v1180
          %v1213 = vadd.f32 %v726, %v1181
          %v1214 = vadd.f32 %v727, %v1182
          %v1215 = vadd.f32 %v728, %v1183
          %v1216 = vadd.f32 %v729, %v1184
          %v1217 = vadd.f32 %v730, %v1185
          %v1218 = vadd.f32 %v731, %v1186
          %v1219 = vadd.f32 %v732, %v1187
          %v1220 = vadd.f32 %v733, %v1188
          %v1221 = vadd.f32 %v734, %v1189
          %v1222 = vadd.f32 %v735, %v1190
          %v1223 = vadd.f32 %v736, %v1191
          %v1224 = vadd.f32 %v737, %v1192
          %v1225 = vadd.f32 %v738, %v1193
          %v1226 = vadd.f32 %v739, %v1194
          %v1227 = vadd.f32 %v740, %v1195
          %v1228 = vadd.f32 %v741, %v1196
          %v1229 = vadd.f32 %v742, %v1197
          %v1230 = vadd.f32 %v743, %v1198
          %v1231 = vadd.f32 %v744, %v1199
          %v1232 = vadd.f32 %v745, %v1200
          %v1233 = vadd.f32 %v746, %v1201
          %v1234 = vadd.f32 %v747, %v1202
          %v1235 = vadd.f32 %v748, %v1203
          %v1236 = vadd.f32 %v749, %v1204
          %v1237 = vadd.f32 %v750, %v1205
          %v1238 = vadd.f32 %v751, %v1206
          %1239 = vst [vmem:[#allocation2] sm:$0xff] %v1207
          %1240 = vst [vmem:[#allocation2 + $0x8] sm:$0xff] %v1208
          %1241 = vst [vmem:[#allocation2 + $0x10] sm:$0xff] %v1209
          %1242 = vst [vmem:[#allocation2 + $0x18] sm:$0xff] %v1210
          %1243 = vst [vmem:[#allocation2 + $0x20] sm:$0xff] %v1211
          %1244 = vst [vmem:[#allocation2 + $0x28] sm:$0xff] %v1212
          %1245 = vst [vmem:[#allocation2 + $0x30] sm:$0xff] %v1213
          %1246 = vst [vmem:[#allocation2 + $0x38] sm:$0xff] %v1214
          %1247 = vst [vmem:[#allocation2 + $0x40] sm:$0xff] %v1215
          %1248 = vst [vmem:[#allocation2 + $0x48] sm:$0xff] %v1216
          %1249 = vst [vmem:[#allocation2 + $0x50] sm:$0xff] %v1217
          %1250 = vst [vmem:[#allocation2 + $0x58] sm:$0xff] %v1218
          %1251 = vst [vmem:[#allocation2 + $0x60] sm:$0xff] %v1219
          %1252 = vst [vmem:[#allocation2 + $0x68] sm:$0xff] %v1220
          %1253 = vst [vmem:[#allocation2 + $0x70] sm:$0xff] %v1221
          %1254 = vst [vmem:[#allocation2 + $0x78] sm:$0xff] %v1222
          %1255 = vst [vmem:[#allocation2 + $0x80] sm:$0xff] %v1223
          %1256 = vst [vmem:[#allocation2 + $0x88] sm:$0xff] %v1224
          %1257 = vst [vmem:[#allocation2 + $0x90] sm:$0xff] %v1225
          %1258 = vst [vmem:[#allocation2 + $0x98] sm:$0xff] %v1226
          %1259 = vst [vmem:[#allocation2 + $0xa0] sm:$0xff] %v1227
          %1260 = vst [vmem:[#allocation2 + $0xa8] sm:$0xff] %v1228
          %1261 = vst [vmem:[#allocation2 + $0xb0] sm:$0xff] %v1229
          %1262 = vst [vmem:[#allocation2 + $0xb8] sm:$0xff] %v1230
          %1263 = vst [vmem:[#allocation2 + $0xc0] sm:$0xff] %v1231
          %1264 = vst [vmem:[#allocation2 + $0xc8] sm:$0xff] %v1232
          %1265 = vst [vmem:[#allocation2 + $0xd0] sm:$0xff] %v1233
          %1266 = vst [vmem:[#allocation2 + $0xd8] sm:$0xff] %v1234
          %1267 = vst [vmem:[#allocation2 + $0xe0] sm:$0xff] %v1235
          %1268 = vst [vmem:[#allocation2 + $0xe8] sm:$0xff] %v1236
          %1269 = vst [vmem:[#allocation2 + $0xf0] sm:$0xff] %v1237
          %1270 = vst [vmem:[#allocation2 + $0xf8] sm:$0xff] %v1238
          %1271 = vmatprep.subr.mxu0 0.0
          %1272 = vmatpush1.msra.mxu0 %v719
          %1273 = vmatprep.subr.mxu0 0.0
          %1274 = vmatpush1.msra.mxu0 %v718
          %1275 = vmatprep.subr.mxu0 0.0
          %1276 = vmatpush1.msra.mxu0 %v717
          %1277 = vmatprep.subr.mxu0 0.0
          %1278 = vmatpush1.msra.mxu0 %v716
          %1279 = vmatprep.subr.mxu0 0.0
          %1280 = vmatpush1.msra.mxu0 %v715
          %1281 = vmatprep.subr.mxu0 0.0
          %1282 = vmatpush1.msra.mxu0 %v714
          %1283 = vmatprep.subr.mxu0 0.0
          %1284 = vmatpush1.msra.mxu0 %v713
          %1285 = vmatprep.subr.mxu0 0.0
          %1286 = vmatpush1.msra.mxu0 %v712
          %1287 = vmatprep.subr.mxu0 0.0
          %1288 = vmatpush1.msra.mxu0 %v711
          %1289 = vmatprep.subr.mxu0 0.0
          %1290 = vmatpush1.msra.mxu0 %v710
          %1291 = vmatprep.subr.mxu0 0.0
          %1292 = vmatpush1.msra.mxu0 %v709
          %1293 = vmatprep.subr.mxu0 0.0
          %1294 = vmatpush1.msra.mxu0 %v708
          %1295 = vmatprep.subr.mxu0 0.0
          %1296 = vmatpush1.msra.mxu0 %v707
          %1297 = vmatprep.subr.mxu0 0.0
          %1298 = vmatpush1.msra.mxu0 %v706
          %1299 = vmatprep.subr.mxu0 0.0
          %1300 = vmatpush1.msra.mxu0 %v705
          %1301 = vmatprep.subr.mxu0 0.0
          %1302 = vmatpush1.msra.mxu0 %v704
          %1303 = vmatprep.subr.mxu0 0.0
          %1304 = vmatpush2.msra.mxu0 0.0
          %1305 = vmatprep.subr.mxu0 0.0
          %1306 = vmatpush2.msra.mxu0 0.0
          %1307 = vmatprep.subr.mxu0 0.0
          %1308 = vmatpush2.msra.mxu0 0.0
          %1309 = vmatprep.subr.mxu0 0.0
          %1310 = vmatpush2.msra.mxu0 0.0
          %1311 = vmatprep.subr.mxu0 0.0
          %1312 = vmatpush2.msra.mxu0 0.0
          %1313 = vmatprep.subr.mxu0 0.0
          %1314 = vmatpush2.msra.mxu0 0.0
          %1315 = vmatprep.subr.mxu0 0.0
          %1316 = vmatpush2.msra.mxu0 0.0
          %1317 = vmatprep.subr.mxu0 0.0
          %1318 = vmatpush2.msra.mxu0 0.0
          %1319 = vmatprep.subr.mxu0 0.0
          %1320 = vmatpush2.msra.mxu0 0.0
          %1321 = vmatprep.subr.mxu0 0.0
          %1322 = vmatpush2.msra.mxu0 0.0
          %1323 = vmatprep.subr.mxu0 0.0
          %1324 = vmatpush2.msra.mxu0 0.0
          %1325 = vmatprep.subr.mxu0 0.0
          %1326 = vmatpush2.msra.mxu0 0.0
          %1327 = vmatprep.subr.mxu0 0.0
          %1328 = vmatpush2.msra.mxu0 0.0
          %1329 = vmatprep.subr.mxu0 0.0
          %1330 = vmatpush2.msra.mxu0 0.0
          %1331 = vmatprep.subr.mxu0 0.0
          %1332 = vmatpush2.msra.mxu0 0.0
          %1333 = vmatprep.subr.mxu0 0.0
          %1334 = vmatpush2.msra.mxu0 0.0
          %1335 = vmatprep.mubr.f32.mxu0 0.0
          %1336 = vmatmul.mubr.f32.gmra.mxu0 %v1207
          %v1337 = vpop.f32.mrf.mxu0
          %v1338 = vadd.f32 0.0, %v1337
          %v1339 = vpop.f32.mrf.mxu0
          %1340 = vmatprep.mubr.f32.mxu0 0.0
          %1341 = vmatmul.mubr.f32.gmra.mxu0 %v1208
          %v1342 = vpop.f32.mrf.mxu0
          %v1343 = vadd.f32 0.0, %v1342
          %v1344 = vpop.f32.mrf.mxu0
          %1345 = vmatprep.mubr.f32.mxu0 0.0
          %1346 = vmatmul.mubr.f32.gmra.mxu0 %v1209
          %v1347 = vpop.f32.mrf.mxu0
          %v1348 = vadd.f32 0.0, %v1347
          %v1349 = vpop.f32.mrf.mxu0
          %1350 = vmatprep.mubr.f32.mxu0 0.0
          %1351 = vmatmul.mubr.f32.gmra.mxu0 %v1210
          %v1352 = vpop.f32.mrf.mxu0
          %v1353 = vadd.f32 0.0, %v1352
          %v1354 = vpop.f32.mrf.mxu0
          %1355 = vmatprep.mubr.f32.mxu0 0.0
          %1356 = vmatmul.mubr.f32.gmra.mxu0 %v1211
          %v1357 = vpop.f32.mrf.mxu0
          %v1358 = vadd.f32 0.0, %v1357
          %v1359 = vpop.f32.mrf.mxu0
          %1360 = vmatprep.mubr.f32.mxu0 0.0
          %1361 = vmatmul.mubr.f32.gmra.mxu0 %v1212
          %v1362 = vpop.f32.mrf.mxu0
          %v1363 = vadd.f32 0.0, %v1362
          %v1364 = vpop.f32.mrf.mxu0
          %1365 = vmatprep.mubr.f32.mxu0 0.0
          %1366 = vmatmul.mubr.f32.gmra.mxu0 %v1213
          %v1367 = vpop.f32.mrf.mxu0
          %v1368 = vadd.f32 0.0, %v1367
          %v1369 = vpop.f32.mrf.mxu0
          %1370 = vmatprep.mubr.f32.mxu0 0.0
          %1371 = vmatmul.mubr.f32.gmra.mxu0 %v1214
          %v1372 = vpop.f32.mrf.mxu0
          %v1373 = vadd.f32 0.0, %v1372
          %v1374 = vpop.f32.mrf.mxu0
          %1375 = vmatprep.mubr.f32.mxu0 0.0
          %1376 = vmatmul.mubr.f32.gmra.mxu0 %v1215
          %v1377 = vpop.f32.mrf.mxu0
          %v1378 = vadd.f32 0.0, %v1377
          %v1379 = vpop.f32.mrf.mxu0
          %1380 = vmatprep.mubr.f32.mxu0 0.0
          %1381 = vmatmul.mubr.f32.gmra.mxu0 %v1216
          %v1382 = vpop.f32.mrf.mxu0
          %v1383 = vadd.f32 0.0, %v1382
          %v1384 = vpop.f32.mrf.mxu0
          %1385 = vmatprep.mubr.f32.mxu0 0.0
          %1386 = vmatmul.mubr.f32.gmra.mxu0 %v1217
          %v1387 = vpop.f32.mrf.mxu0
          %v1388 = vadd.f32 0.0, %v1387
          %v1389 = vpop.f32.mrf.mxu0
          %1390 = vmatprep.mubr.f32.mxu0 0.0
          %1391 = vmatmul.mubr.f32.gmra.mxu0 %v1218
          %v1392 = vpop.f32.mrf.mxu0
          %v1393 = vadd.f32 0.0, %v1392
          %v1394 = vpop.f32.mrf.mxu0
          %1395 = vmatprep.mubr.f32.mxu0 0.0
          %1396 = vmatmul.mubr.f32.gmra.mxu0 %v1219
          %v1397 = vpop.f32.mrf.mxu0
          %v1398 = vadd.f32 0.0, %v1397
          %v1399 = vpop.f32.mrf.mxu0
          %1400 = vmatprep.mubr.f32.mxu0 0.0
          %1401 = vmatmul.mubr.f32.gmra.mxu0 %v1220
          %v1402 = vpop.f32.mrf.mxu0
          %v1403 = vadd.f32 0.0, %v1402
          %v1404 = vpop.f32.mrf.mxu0
          %1405 = vmatprep.mubr.f32.mxu0 0.0
          %1406 = vmatmul.mubr.f32.gmra.mxu0 %v1221
          %v1407 = vpop.f32.mrf.mxu0
          %v1408 = vadd.f32 0.0, %v1407
          %v1409 = vpop.f32.mrf.mxu0
          %1410 = vmatprep.mubr.f32.mxu0 0.0
          %1411 = vmatmul.mubr.f32.gmra.mxu0 %v1222
          %v1412 = vpop.f32.mrf.mxu0
          %v1413 = vadd.f32 0.0, %v1412
          %v1414 = vpop.f32.mrf.mxu0
          %1415 = vmatprep.mubr.f32.mxu0 0.0
          %1416 = vmatmul.mubr.f32.gmra.mxu0 %v1223
          %v1417 = vpop.f32.mrf.mxu0
          %v1418 = vadd.f32 0.0, %v1417
          %v1419 = vpop.f32.mrf.mxu0
          %1420 = vmatprep.mubr.f32.mxu0 0.0
          %1421 = vmatmul.mubr.f32.gmra.mxu0 %v1224
          %v1422 = vpop.f32.mrf.mxu0
          %v1423 = vadd.f32 0.0, %v1422
          %v1424 = vpop.f32.mrf.mxu0
          %1425 = vmatprep.mubr.f32.mxu0 0.0
          %1426 = vmatmul.mubr.f32.gmra.mxu0 %v1225
          %v1427 = vpop.f32.mrf.mxu0
          %v1428 = vadd.f32 0.0, %v1427
          %v1429 = vpop.f32.mrf.mxu0
          %1430 = vmatprep.mubr.f32.mxu0 0.0
          %1431 = vmatmul.mubr.f32.gmra.mxu0 %v1226
          %v1432 = vpop.f32.mrf.mxu0
          %v1433 = vadd.f32 0.0, %v1432
          %v1434 = vpop.f32.mrf.mxu0
          %1435 = vmatprep.mubr.f32.mxu0 0.0
          %1436 = vmatmul.mubr.f32.gmra.mxu0 %v1227
          %v1437 = vpop.f32.mrf.mxu0
          %v1438 = vadd.f32 0.0, %v1437
          %v1439 = vpop.f32.mrf.mxu0
          %1440 = vmatprep.mubr.f32.mxu0 0.0
          %1441 = vmatmul.mubr.f32.gmra.mxu0 %v1228
          %v1442 = vpop.f32.mrf.mxu0
          %v1443 = vadd.f32 0.0, %v1442
          %v1444 = vpop.f32.mrf.mxu0
          %1445 = vmatprep.mubr.f32.mxu0 0.0
          %1446 = vmatmul.mubr.f32.gmra.mxu0 %v1229
          %v1447 = vpop.f32.mrf.mxu0
          %v1448 = vadd.f32 0.0, %v1447
          %v1449 = vpop.f32.mrf.mxu0
          %1450 = vmatprep.mubr.f32.mxu0 0.0
          %1451 = vmatmul.mubr.f32.gmra.mxu0 %v1230
          %v1452 = vpop.f32.mrf.mxu0
          %v1453 = vadd.f32 0.0, %v1452
          %v1454 = vpop.f32.mrf.mxu0
          %1455 = vmatprep.mubr.f32.mxu0 0.0
          %1456 = vmatmul.mubr.f32.gmra.mxu0 %v1231
          %v1457 = vpop.f32.mrf.mxu0
          %v1458 = vadd.f32 0.0, %v1457
          %v1459 = vpop.f32.mrf.mxu0
          %1460 = vmatprep.mubr.f32.mxu0 0.0
          %1461 = vmatmul.mubr.f32.gmra.mxu0 %v1232
          %v1462 = vpop.f32.mrf.mxu0
          %v1463 = vadd.f32 0.0, %v1462
          %v1464 = vpop.f32.mrf.mxu0
          %1465 = vmatprep.mubr.f32.mxu0 0.0
          %1466 = vmatmul.mubr.f32.gmra.mxu0 %v1233
          %v1467 = vpop.f32.mrf.mxu0
          %v1468 = vadd.f32 0.0, %v1467
          %v1469 = vpop.f32.mrf.mxu0
          %1470 = vmatprep.mubr.f32.mxu0 0.0
          %1471 = vmatmul.mubr.f32.gmra.mxu0 %v1234
          %v1472 = vpop.f32.mrf.mxu0
          %v1473 = vadd.f32 0.0, %v1472
          %v1474 = vpop.f32.mrf.mxu0
          %1475 = vmatprep.mubr.f32.mxu0 0.0
          %1476 = vmatmul.mubr.f32.gmra.mxu0 %v1235
          %v1477 = vpop.f32.mrf.mxu0
          %v1478 = vadd.f32 0.0, %v1477
          %v1479 = vpop.f32.mrf.mxu0
          %1480 = vmatprep.mubr.f32.mxu0 0.0
          %1481 = vmatmul.mubr.f32.gmra.mxu0 %v1236
          %v1482 = vpop.f32.mrf.mxu0
          %v1483 = vadd.f32 0.0, %v1482
          %v1484 = vpop.f32.mrf.mxu0
          %1485 = vmatprep.mubr.f32.mxu0 0.0
          %1486 = vmatmul.mubr.f32.gmra.mxu0 %v1237
          %v1487 = vpop.f32.mrf.mxu0
          %v1488 = vadd.f32 0.0, %v1487
          %v1489 = vpop.f32.mrf.mxu0
          %1490 = vmatprep.mubr.f32.mxu0 0.0
          %1491 = vmatmul.mubr.f32.gmra.mxu0 %v1238
          %v1492 = vpop.f32.mrf.mxu0
          %v1493 = vadd.f32 0.0, %v1492
          %v1494 = vpop.f32.mrf.mxu0
          %1495 = vdwg.mxu0
          %v1496 = vld [vmem:[#allocation5] sm:$0x1]
          %v1497 = vadd.f32 %v1338, %v1343
          %v1498 = vadd.f32 %v1497, %v1348
          %v1499 = vadd.f32 %v1498, %v1353
          %v1500 = vadd.f32 %v1499, %v1358
          %v1501 = vadd.f32 %v1500, %v1363
          %v1502 = vadd.f32 %v1501, %v1368
          %v1503 = vadd.f32 %v1502, %v1373
          %v1504 = vadd.f32 %v1503, %v1378
          %v1505 = vadd.f32 %v1504, %v1383
          %v1506 = vadd.f32 %v1505, %v1388
          %v1507 = vadd.f32 %v1506, %v1393
          %v1508 = vadd.f32 %v1507, %v1398
          %v1509 = vadd.f32 %v1508, %v1403
          %v1510 = vadd.f32 %v1509, %v1408
          %v1511 = vadd.f32 %v1510, %v1413
          %v1512 = vadd.f32 %v1511, %v1418
          %v1513 = vadd.f32 %v1512, %v1423
          %v1514 = vadd.f32 %v1513, %v1428
          %v1515 = vadd.f32 %v1514, %v1433
          %v1516 = vadd.f32 %v1515, %v1438
          %v1517 = vadd.f32 %v1516, %v1443
          %v1518 = vadd.f32 %v1517, %v1448
          %v1519 = vadd.f32 %v1518, %v1453
          %v1520 = vadd.f32 %v1519, %v1458
          %v1521 = vadd.f32 %v1520, %v1463
          %v1522 = vadd.f32 %v1521, %v1468
          %v1523 = vadd.f32 %v1522, %v1473
          %v1524 = vadd.f32 %v1523, %v1478
          %v1525 = vadd.f32 %v1524, %v1483
          %v1526 = vadd.f32 %v1525, %v1488
          %v1527 = vadd.f32 %v1526, %v1493
          %v1528 = vrot.slane %v1527, 4
          %v1529 = vadd.f32 %v1527, %v1528
          %v1530 = vrot.slane %v1529, 2
          %v1531 = vadd.f32 %v1529, %v1530
          %v1532 = vrot.slane %v1531, 1
          %v1533 = vadd.f32 %v1531, %v1532
          %v1534 = vadd.f32 %v1496, %v1533
          %1535 = vst [vmem:[#allocation5] sm:$0x1] %v1534
          %v1536 = vld [vmem:[#allocation6] sm:$0x1]
          %v1537 = vmul.f32 %v1338, %v1338
          %v1538 = vmul.f32 %v1343, %v1343
          %v1539 = vmul.f32 %v1348, %v1348
          %v1540 = vmul.f32 %v1353, %v1353
          %v1541 = vmul.f32 %v1358, %v1358
          %v1542 = vmul.f32 %v1363, %v1363
          %v1543 = vmul.f32 %v1368, %v1368
          %v1544 = vmul.f32 %v1373, %v1373
          %v1545 = vmul.f32 %v1378, %v1378
          %v1546 = vmul.f32 %v1383, %v1383
          %v1547 = vmul.f32 %v1388, %v1388
          %v1548 = vmul.f32 %v1393, %v1393
          %v1549 = vmul.f32 %v1398, %v1398
          %v1550 = vmul.f32 %v1403, %v1403
          %v1551 = vmul.f32 %v1408, %v1408
          %v1552 = vmul.f32 %v1413, %v1413
          %v1553 = vmul.f32 %v1418, %v1418
          %v1554 = vmul.f32 %v1423, %v1423
          %v1555 = vmul.f32 %v1428, %v1428
          %v1556 = vmul.f32 %v1433, %v1433
          %v1557 = vmul.f32 %v1438, %v1438
          %v1558 = vmul.f32 %v1443, %v1443
          %v1559 = vmul.f32 %v1448, %v1448
          %v1560 = vmul.f32 %v1453, %v1453
          %v1561 = vmul.f32 %v1458, %v1458
          %v1562 = vmul.f32 %v1463, %v1463
          %v1563 = vmul.f32 %v1468, %v1468
          %v1564 = vmul.f32 %v1473, %v1473
          %v1565 = vmul.f32 %v1478, %v1478
          %v1566 = vmul.f32 %v1483, %v1483
          %v1567 = vmul.f32 %v1488, %v1488
          %v1568 = vmul.f32 %v1493, %v1493
          %v1569 = vadd.f32 %v1537, %v1538
          %v1570 = vadd.f32 %v1569, %v1539
          %v1571 = vadd.f32 %v1570, %v1540
          %v1572 = vadd.f32 %v1571, %v1541
          %v1573 = vadd.f32 %v1572, %v1542
          %v1574 = vadd.f32 %v1573, %v1543
          %v1575 = vadd.f32 %v1574, %v1544
          %v1576 = vadd.f32 %v1575, %v1545
          %v1577 = vadd.f32 %v1576, %v1546
          %v1578 = vadd.f32 %v1577, %v1547
          %v1579 = vadd.f32 %v1578, %v1548
          %v1580 = vadd.f32 %v1579, %v1549
          %v1581 = vadd.f32 %v1580, %v1550
          %v1582 = vadd.f32 %v1581, %v1551
          %v1583 = vadd.f32 %v1582, %v1552
          %v1584 = vadd.f32 %v1583, %v1553
          %v1585 = vadd.f32 %v1584, %v1554
          %v1586 = vadd.f32 %v1585, %v1555
          %v1587 = vadd.f32 %v1586, %v1556
          %v1588 = vadd.f32 %v1587, %v1557
          %v1589 = vadd.f32 %v1588, %v1558
          %v1590 = vadd.f32 %v1589, %v1559
          %v1591 = vadd.f32 %v1590, %v1560
          %v1592 = vadd.f32 %v1591, %v1561
          %v1593 = vadd.f32 %v1592, %v1562
          %v1594 = vadd.f32 %v1593, %v1563
          %v1595 = vadd.f32 %v1594, %v1564
          %v1596 = vadd.f32 %v1595, %v1565
          %v1597 = vadd.f32 %v1596, %v1566
          %v1598 = vadd.f32 %v1597, %v1567
          %v1599 = vadd.f32 %v1598, %v1568
          %v1600 = vrot.slane %v1599, 4
          %v1601 = vadd.f32 %v1599, %v1600
          %v1602 = vrot.slane %v1601, 2
          %v1603 = vadd.f32 %v1601, %v1602
          %v1604 = vrot.slane %v1603, 1
          %v1605 = vadd.f32 %v1603, %v1604
          %v1606 = vadd.f32 %v1536, %v1605
          %1607 = vst [vmem:[#allocation6] sm:$0x1] %v1606
          %v1608 = vld [vmem:[#allocation5] sm:$0x1]
          %v1609 = vmul.f32 %v1608, 0.00390625
          %v1610 = vld [vmem:[#allocation6] sm:$0x1]
          %v1611 = vmul.f32 %v1610, 0.00390625
          %v1612 = vmul.f32 %v1609, %v1609
          %v1613 = vsub.f32 %v1611, %v1612
          %v1614 = vadd.f32 %v1613, 1e-05
          %v1615 = vrsqrt.pop %v1614
          %v1616 = vld [vmem:[%s201] sm:$0x1]
          %v1617 = vmul.f32 %v1616, %v1615
          %v1618 = vld [vmem:[%s170] sm:$0x1]
          %v1619 = vmul.f32 %v1609, %v1617
          %v1620 = vsub.f32 %v1618, %v1619
          %1621 = vst [vmem:[#allocation4] sm:$0x1] %v1620
          %v1622 = vld [vmem:[%s162] sm:$0xff]
          %v1623 = vld [vmem:[%s162 + $0x8] sm:$0xff]
          %v1624 = vld [vmem:[%s162 + $0x10] sm:$0xff]
          %v1625 = vld [vmem:[%s162 + $0x18] sm:$0xff]
          %v1626 = vld [vmem:[%s162 + $0x20] sm:$0xff]
          %v1627 = vld [vmem:[%s162 + $0x28] sm:$0xff]
          %v1628 = vld [vmem:[%s162 + $0x30] sm:$0xff]
          %v1629 = vld [vmem:[%s162 + $0x38] sm:$0xff]
          %v1630 = vld [vmem:[%s162 + $0x40] sm:$0xff]
          %v1631 = vld [vmem:[%s162 + $0x48] sm:$0xff]
          %v1632 = vld [vmem:[%s162 + $0x50] sm:$0xff]
          %v1633 = vld [vmem:[%s162 + $0x58] sm:$0xff]
          %v1634 = vld [vmem:[%s162 + $0x60] sm:$0xff]
          %v1635 = vld [vmem:[%s162 + $0x68] sm:$0xff]
          %v1636 = vld [vmem:[%s162 + $0x70] sm:$0xff]
          %v1637 = vld [vmem:[%s162 + $0x78] sm:$0xff]
          %v1639 = vlaneseq
          %v1640 = vshrl.u32 %v1639, 7
          %v1641 = vsub.s32 0, %v1640
          %v1642 = vrot.slane %v1617, %v1641
          %v1644 = vmul.f32 %v1622, %v1642
          %v1645 = vmul.f32 %v1623, %v1642
          %v1646 = vmul.f32 %v1624, %v1642
          %v1647 = vmul.f32 %v1625, %v1642
          %v1648 = vmul.f32 %v1626, %v1642
          %v1649 = vmul.f32 %v1627, %v1642
          %v1650 = vmul.f32 %v1628, %v1642
          %v1651 = vmul.f32 %v1629, %v1642
          %v1652 = vmul.f32 %v1630, %v1642
          %v1653 = vmul.f32 %v1631, %v1642
          %v1654 = vmul.f32 %v1632, %v1642
          %v1655 = vmul.f32 %v1633, %v1642
          %v1656 = vmul.f32 %v1634, %v1642
          %v1657 = vmul.f32 %v1635, %v1642
          %v1658 = vmul.f32 %v1636, %v1642
          %v1659 = vmul.f32 %v1637, %v1642
          %1660 = vst [vmem:[#allocation3] sm:$0xff] %v1644
          %1661 = vst [vmem:[#allocation3 + $0x8] sm:$0xff] %v1645
          %1662 = vst [vmem:[#allocation3 + $0x10] sm:$0xff] %v1646
          %1663 = vst [vmem:[#allocation3 + $0x18] sm:$0xff] %v1647
          %1664 = vst [vmem:[#allocation3 + $0x20] sm:$0xff] %v1648
          %1665 = vst [vmem:[#allocation3 + $0x28] sm:$0xff] %v1649
          %1666 = vst [vmem:[#allocation3 + $0x30] sm:$0xff] %v1650
          %1667 = vst [vmem:[#allocation3 + $0x38] sm:$0xff] %v1651
          %1668 = vst [vmem:[#allocation3 + $0x40] sm:$0xff] %v1652
          %1669 = vst [vmem:[#allocation3 + $0x48] sm:$0xff] %v1653
          %1670 = vst [vmem:[#allocation3 + $0x50] sm:$0xff] %v1654
          %1671 = vst [vmem:[#allocation3 + $0x58] sm:$0xff] %v1655
          %1672 = vst [vmem:[#allocation3 + $0x60] sm:$0xff] %v1656
          %1673 = vst [vmem:[#allocation3 + $0x68] sm:$0xff] %v1657
          %1674 = vst [vmem:[#allocation3 + $0x70] sm:$0xff] %v1658
          %1675 = vst [vmem:[#allocation3 + $0x78] sm:$0xff] %v1659
        $region52: #{tpu_custom_call.1} parent=31 // pred_fallthru
          _
        %p1676 = scmp.eq.s32.totalorder %s21, 3
        // Predicated region
        $region53: #{tpu_custom_call.1} parent=31 // pred_check
          %p1677 = pneg %p1676
        $region54: #{tpu_custom_call.1} parent=31 // pred_check_branch
          %1679 = sbr.rel (%p1677) target = $region56
        $region55: #{tpu_custom_call.1} parent=31 // pred_region
          %v1680 = vld [vmem:[#allocation3] sm:$0xff]
          %v1681 = vld [vmem:[#allocation3 + $0x8] sm:$0xff]
          %v1682 = vld [vmem:[#allocation3 + $0x10] sm:$0xff]
          %v1683 = vld [vmem:[#allocation3 + $0x18] sm:$0xff]
          %v1684 = vld [vmem:[#allocation3 + $0x20] sm:$0xff]
          %v1685 = vld [vmem:[#allocation3 + $0x28] sm:$0xff]
          %v1686 = vld [vmem:[#allocation3 + $0x30] sm:$0xff]
          %v1687 = vld [vmem:[#allocation3 + $0x38] sm:$0xff]
          %v1688 = vld [vmem:[#allocation3 + $0x40] sm:$0xff]
          %v1689 = vld [vmem:[#allocation3 + $0x48] sm:$0xff]
          %v1690 = vld [vmem:[#allocation3 + $0x50] sm:$0xff]
          %v1691 = vld [vmem:[#allocation3 + $0x58] sm:$0xff]
          %v1692 = vld [vmem:[#allocation3 + $0x60] sm:$0xff]
          %v1693 = vld [vmem:[#allocation3 + $0x68] sm:$0xff]
          %v1694 = vld [vmem:[#allocation3 + $0x70] sm:$0xff]
          %v1695 = vld [vmem:[#allocation3 + $0x78] sm:$0xff]
          %v1696 = vld [vmem:[#allocation4] sm:$0x1]
          %v1697 = vld [vmem:[#allocation2] sm:$0xff]
          %v1698 = vld [vmem:[#allocation2 + $0x8] sm:$0xff]
          %v1699 = vld [vmem:[#allocation2 + $0x10] sm:$0xff]
          %v1700 = vld [vmem:[#allocation2 + $0x18] sm:$0xff]
          %v1701 = vld [vmem:[#allocation2 + $0x20] sm:$0xff]
          %v1702 = vld [vmem:[#allocation2 + $0x28] sm:$0xff]
          %v1703 = vld [vmem:[#allocation2 + $0x30] sm:$0xff]
          %v1704 = vld [vmem:[#allocation2 + $0x38] sm:$0xff]
          %v1705 = vld [vmem:[#allocation2 + $0x40] sm:$0xff]
          %v1706 = vld [vmem:[#allocation2 + $0x48] sm:$0xff]
          %v1707 = vld [vmem:[#allocation2 + $0x50] sm:$0xff]
          %v1708 = vld [vmem:[#allocation2 + $0x58] sm:$0xff]
          %v1709 = vld [vmem:[#allocation2 + $0x60] sm:$0xff]
          %v1710 = vld [vmem:[#allocation2 + $0x68] sm:$0xff]
          %v1711 = vld [vmem:[#allocation2 + $0x70] sm:$0xff]
          %v1712 = vld [vmem:[#allocation2 + $0x78] sm:$0xff]
          %v1713 = vld [vmem:[#allocation2 + $0x80] sm:$0xff]
          %v1714 = vld [vmem:[#allocation2 + $0x88] sm:$0xff]
          %v1715 = vld [vmem:[#allocation2 + $0x90] sm:$0xff]
          %v1716 = vld [vmem:[#allocation2 + $0x98] sm:$0xff]
          %v1717 = vld [vmem:[#allocation2 + $0xa0] sm:$0xff]
          %v1718 = vld [vmem:[#allocation2 + $0xa8] sm:$0xff]
          %v1719 = vld [vmem:[#allocation2 + $0xb0] sm:$0xff]
          %v1720 = vld [vmem:[#allocation2 + $0xb8] sm:$0xff]
          %v1721 = vld [vmem:[#allocation2 + $0xc0] sm:$0xff]
          %v1722 = vld [vmem:[#allocation2 + $0xc8] sm:$0xff]
          %v1723 = vld [vmem:[#allocation2 + $0xd0] sm:$0xff]
          %v1724 = vld [vmem:[#allocation2 + $0xd8] sm:$0xff]
          %v1725 = vld [vmem:[#allocation2 + $0xe0] sm:$0xff]
          %v1726 = vld [vmem:[#allocation2 + $0xe8] sm:$0xff]
          %v1727 = vld [vmem:[#allocation2 + $0xf0] sm:$0xff]
          %v1728 = vld [vmem:[#allocation2 + $0xf8] sm:$0xff]
          %v1730 = vlaneseq
          %v1731 = vshrl.u32 %v1730, 7
          %v1732 = vsub.s32 0, %v1731
          %v1733 = vrot.slane %v1696, %v1732
          %1735 = vmatprep.subr.mxu0 0.0
          %1736 = vmatpush1.msra.mxu0 %v1695
          %1737 = vmatprep.subr.mxu0 0.0
          %1738 = vmatpush1.msra.mxu0 %v1694
          %1739 = vmatprep.subr.mxu0 0.0
          %1740 = vmatpush1.msra.mxu0 %v1693
          %1741 = vmatprep.subr.mxu0 0.0
          %1742 = vmatpush1.msra.mxu0 %v1692
          %1743 = vmatprep.subr.mxu0 0.0
          %1744 = vmatpush1.msra.mxu0 %v1691
          %1745 = vmatprep.subr.mxu0 0.0
          %1746 = vmatpush1.msra.mxu0 %v1690
          %1747 = vmatprep.subr.mxu0 0.0
          %1748 = vmatpush1.msra.mxu0 %v1689
          %1749 = vmatprep.subr.mxu0 0.0
          %1750 = vmatpush1.msra.mxu0 %v1688
          %1751 = vmatprep.subr.mxu0 0.0
          %1752 = vmatpush1.msra.mxu0 %v1687
          %1753 = vmatprep.subr.mxu0 0.0
          %1754 = vmatpush1.msra.mxu0 %v1686
          %1755 = vmatprep.subr.mxu0 0.0
          %1756 = vmatpush1.msra.mxu0 %v1685
          %1757 = vmatprep.subr.mxu0 0.0
          %1758 = vmatpush1.msra.mxu0 %v1684
          %1759 = vmatprep.subr.mxu0 0.0
          %1760 = vmatpush1.msra.mxu0 %v1683
          %1761 = vmatprep.subr.mxu0 0.0
          %1762 = vmatpush1.msra.mxu0 %v1682
          %1763 = vmatprep.subr.mxu0 0.0
          %1764 = vmatpush1.msra.mxu0 %v1681
          %1765 = vmatprep.subr.mxu0 0.0
          %1766 = vmatpush1.msra.mxu0 %v1680
          %1767 = vmatprep.subr.mxu0 0.0
          %1768 = vmatpush2.msra.mxu0 0.0
          %1769 = vmatprep.subr.mxu0 0.0
          %1770 = vmatpush2.msra.mxu0 0.0
          %1771 = vmatprep.subr.mxu0 0.0
          %1772 = vmatpush2.msra.mxu0 0.0
          %1773 = vmatprep.subr.mxu0 0.0
          %1774 = vmatpush2.msra.mxu0 0.0
          %1775 = vmatprep.subr.mxu0 0.0
          %1776 = vmatpush2.msra.mxu0 0.0
          %1777 = vmatprep.subr.mxu0 0.0
          %1778 = vmatpush2.msra.mxu0 0.0
          %1779 = vmatprep.subr.mxu0 0.0
          %1780 = vmatpush2.msra.mxu0 0.0
          %1781 = vmatprep.subr.mxu0 0.0
          %1782 = vmatpush2.msra.mxu0 0.0
          %1783 = vmatprep.subr.mxu0 0.0
          %1784 = vmatpush2.msra.mxu0 0.0
          %1785 = vmatprep.subr.mxu0 0.0
          %1786 = vmatpush2.msra.mxu0 0.0
          %1787 = vmatprep.subr.mxu0 0.0
          %1788 = vmatpush2.msra.mxu0 0.0
          %1789 = vmatprep.subr.mxu0 0.0
          %1790 = vmatpush2.msra.mxu0 0.0
          %1791 = vmatprep.subr.mxu0 0.0
          %1792 = vmatpush2.msra.mxu0 0.0
          %1793 = vmatprep.subr.mxu0 0.0
          %1794 = vmatpush2.msra.mxu0 0.0
          %1795 = vmatprep.subr.mxu0 0.0
          %1796 = vmatpush2.msra.mxu0 0.0
          %1797 = vmatprep.subr.mxu0 0.0
          %1798 = vmatpush2.msra.mxu0 0.0
          %1799 = vmatprep.mubr.f32.mxu0 0.0
          %1800 = vmatmul.mubr.f32.gmra.mxu0 %v1697
          %v1801 = vpop.f32.mrf.mxu0
          %v1802 = vadd.f32 %v1733, %v1801
          %v1803 = vpop.f32.mrf.mxu0
          %1804 = vmatprep.mubr.f32.mxu0 0.0
          %1805 = vmatmul.mubr.f32.gmra.mxu0 %v1698
          %v1806 = vpop.f32.mrf.mxu0
          %v1807 = vadd.f32 %v1733, %v1806
          %v1808 = vpop.f32.mrf.mxu0
          %1809 = vmatprep.mubr.f32.mxu0 0.0
          %1810 = vmatmul.mubr.f32.gmra.mxu0 %v1699
          %v1811 = vpop.f32.mrf.mxu0
          %v1812 = vadd.f32 %v1733, %v1811
          %v1813 = vpop.f32.mrf.mxu0
          %1814 = vmatprep.mubr.f32.mxu0 0.0
          %1815 = vmatmul.mubr.f32.gmra.mxu0 %v1700
          %v1816 = vpop.f32.mrf.mxu0
          %v1817 = vadd.f32 %v1733, %v1816
          %v1818 = vpop.f32.mrf.mxu0
          %1819 = vmatprep.mubr.f32.mxu0 0.0
          %1820 = vmatmul.mubr.f32.gmra.mxu0 %v1701
          %v1821 = vpop.f32.mrf.mxu0
          %v1822 = vadd.f32 %v1733, %v1821
          %v1823 = vpop.f32.mrf.mxu0
          %1824 = vmatprep.mubr.f32.mxu0 0.0
          %1825 = vmatmul.mubr.f32.gmra.mxu0 %v1702
          %v1826 = vpop.f32.mrf.mxu0
          %v1827 = vadd.f32 %v1733, %v1826
          %v1828 = vpop.f32.mrf.mxu0
          %1829 = vmatprep.mubr.f32.mxu0 0.0
          %1830 = vmatmul.mubr.f32.gmra.mxu0 %v1703
          %v1831 = vpop.f32.mrf.mxu0
          %v1832 = vadd.f32 %v1733, %v1831
          %v1833 = vpop.f32.mrf.mxu0
          %1834 = vmatprep.mubr.f32.mxu0 0.0
          %1835 = vmatmul.mubr.f32.gmra.mxu0 %v1704
          %v1836 = vpop.f32.mrf.mxu0
          %v1837 = vadd.f32 %v1733, %v1836
          %v1838 = vpop.f32.mrf.mxu0
          %1839 = vmatprep.mubr.f32.mxu0 0.0
          %1840 = vmatmul.mubr.f32.gmra.mxu0 %v1705
          %v1841 = vpop.f32.mrf.mxu0
          %v1842 = vadd.f32 %v1733, %v1841
          %v1843 = vpop.f32.mrf.mxu0
          %1844 = vmatprep.mubr.f32.mxu0 0.0
          %1845 = vmatmul.mubr.f32.gmra.mxu0 %v1706
          %v1846 = vpop.f32.mrf.mxu0
          %v1847 = vadd.f32 %v1733, %v1846
          %v1848 = vpop.f32.mrf.mxu0
          %1849 = vmatprep.mubr.f32.mxu0 0.0
          %1850 = vmatmul.mubr.f32.gmra.mxu0 %v1707
          %v1851 = vpop.f32.mrf.mxu0
          %v1852 = vadd.f32 %v1733, %v1851
          %v1853 = vpop.f32.mrf.mxu0
          %1854 = vmatprep.mubr.f32.mxu0 0.0
          %1855 = vmatmul.mubr.f32.gmra.mxu0 %v1708
          %v1856 = vpop.f32.mrf.mxu0
          %v1857 = vadd.f32 %v1733, %v1856
          %v1858 = vpop.f32.mrf.mxu0
          %1859 = vmatprep.mubr.f32.mxu0 0.0
          %1860 = vmatmul.mubr.f32.gmra.mxu0 %v1709
          %v1861 = vpop.f32.mrf.mxu0
          %v1862 = vadd.f32 %v1733, %v1861
          %v1863 = vpop.f32.mrf.mxu0
          %1864 = vmatprep.mubr.f32.mxu0 0.0
          %1865 = vmatmul.mubr.f32.gmra.mxu0 %v1710
          %v1866 = vpop.f32.mrf.mxu0
          %v1867 = vadd.f32 %v1733, %v1866
          %v1868 = vpop.f32.mrf.mxu0
          %1869 = vmatprep.mubr.f32.mxu0 0.0
          %1870 = vmatmul.mubr.f32.gmra.mxu0 %v1711
          %v1871 = vpop.f32.mrf.mxu0
          %v1872 = vadd.f32 %v1733, %v1871
          %v1873 = vpop.f32.mrf.mxu0
          %1874 = vmatprep.mubr.f32.mxu0 0.0
          %1875 = vmatmul.mubr.f32.gmra.mxu0 %v1712
          %v1876 = vpop.f32.mrf.mxu0
          %v1877 = vadd.f32 %v1733, %v1876
          %v1878 = vpop.f32.mrf.mxu0
          %1879 = vmatprep.mubr.f32.mxu0 0.0
          %1880 = vmatmul.mubr.f32.gmra.mxu0 %v1713
          %v1881 = vpop.f32.mrf.mxu0
          %v1882 = vadd.f32 %v1733, %v1881
          %v1883 = vpop.f32.mrf.mxu0
          %1884 = vmatprep.mubr.f32.mxu0 0.0
          %1885 = vmatmul.mubr.f32.gmra.mxu0 %v1714
          %v1886 = vpop.f32.mrf.mxu0
          %v1887 = vadd.f32 %v1733, %v1886
          %v1888 = vpop.f32.mrf.mxu0
          %1889 = vmatprep.mubr.f32.mxu0 0.0
          %1890 = vmatmul.mubr.f32.gmra.mxu0 %v1715
          %v1891 = vpop.f32.mrf.mxu0
          %v1892 = vadd.f32 %v1733, %v1891
          %v1893 = vpop.f32.mrf.mxu0
          %1894 = vmatprep.mubr.f32.mxu0 0.0
          %1895 = vmatmul.mubr.f32.gmra.mxu0 %v1716
          %v1896 = vpop.f32.mrf.mxu0
          %v1897 = vadd.f32 %v1733, %v1896
          %v1898 = vpop.f32.mrf.mxu0
          %1899 = vmatprep.mubr.f32.mxu0 0.0
          %1900 = vmatmul.mubr.f32.gmra.mxu0 %v1717
          %v1901 = vpop.f32.mrf.mxu0
          %v1902 = vadd.f32 %v1733, %v1901
          %v1903 = vpop.f32.mrf.mxu0
          %1904 = vmatprep.mubr.f32.mxu0 0.0
          %1905 = vmatmul.mubr.f32.gmra.mxu0 %v1718
          %v1906 = vpop.f32.mrf.mxu0
          %v1907 = vadd.f32 %v1733, %v1906
          %v1908 = vpop.f32.mrf.mxu0
          %1909 = vmatprep.mubr.f32.mxu0 0.0
          %1910 = vmatmul.mubr.f32.gmra.mxu0 %v1719
          %v1911 = vpop.f32.mrf.mxu0
          %v1912 = vadd.f32 %v1733, %v1911
          %v1913 = vpop.f32.mrf.mxu0
          %1914 = vmatprep.mubr.f32.mxu0 0.0
          %1915 = vmatmul.mubr.f32.gmra.mxu0 %v1720
          %v1916 = vpop.f32.mrf.mxu0
          %v1917 = vadd.f32 %v1733, %v1916
          %v1918 = vpop.f32.mrf.mxu0
          %1919 = vmatprep.mubr.f32.mxu0 0.0
          %1920 = vmatmul.mubr.f32.gmra.mxu0 %v1721
          %v1921 = vpop.f32.mrf.mxu0
          %v1922 = vadd.f32 %v1733, %v1921
          %v1923 = vpop.f32.mrf.mxu0
          %1924 = vmatprep.mubr.f32.mxu0 0.0
          %1925 = vmatmul.mubr.f32.gmra.mxu0 %v1722
          %v1926 = vpop.f32.mrf.mxu0
          %v1927 = vadd.f32 %v1733, %v1926
          %v1928 = vpop.f32.mrf.mxu0
          %1929 = vmatprep.mubr.f32.mxu0 0.0
          %1930 = vmatmul.mubr.f32.gmra.mxu0 %v1723
          %v1931 = vpop.f32.mrf.mxu0
          %v1932 = vadd.f32 %v1733, %v1931
          %v1933 = vpop.f32.mrf.mxu0
          %1934 = vmatprep.mubr.f32.mxu0 0.0
          %1935 = vmatmul.mubr.f32.gmra.mxu0 %v1724
          %v1936 = vpop.f32.mrf.mxu0
          %v1937 = vadd.f32 %v1733, %v1936
          %v1938 = vpop.f32.mrf.mxu0
          %1939 = vmatprep.mubr.f32.mxu0 0.0
          %1940 = vmatmul.mubr.f32.gmra.mxu0 %v1725
          %v1941 = vpop.f32.mrf.mxu0
          %v1942 = vadd.f32 %v1733, %v1941
          %v1943 = vpop.f32.mrf.mxu0
          %1944 = vmatprep.mubr.f32.mxu0 0.0
          %1945 = vmatmul.mubr.f32.gmra.mxu0 %v1726
          %v1946 = vpop.f32.mrf.mxu0
          %v1947 = vadd.f32 %v1733, %v1946
          %v1948 = vpop.f32.mrf.mxu0
          %1949 = vmatprep.mubr.f32.mxu0 0.0
          %1950 = vmatmul.mubr.f32.gmra.mxu0 %v1727
          %v1951 = vpop.f32.mrf.mxu0
          %v1952 = vadd.f32 %v1733, %v1951
          %v1953 = vpop.f32.mrf.mxu0
          %1954 = vmatprep.mubr.f32.mxu0 0.0
          %1955 = vmatmul.mubr.f32.gmra.mxu0 %v1728
          %v1956 = vpop.f32.mrf.mxu0
          %v1957 = vadd.f32 %v1733, %v1956
          %v1958 = vpop.f32.mrf.mxu0
          %1959 = vdwg.mxu0
          %v1960 = vmax.f32 %v1802, 0.0
          %v1961 = vmax.f32 %v1807, 0.0
          %v1962 = vmax.f32 %v1812, 0.0
          %v1963 = vmax.f32 %v1817, 0.0
          %v1964 = vmax.f32 %v1822, 0.0
          %v1965 = vmax.f32 %v1827, 0.0
          %v1966 = vmax.f32 %v1832, 0.0
          %v1967 = vmax.f32 %v1837, 0.0
          %v1968 = vmax.f32 %v1842, 0.0
          %v1969 = vmax.f32 %v1847, 0.0
          %v1970 = vmax.f32 %v1852, 0.0
          %v1971 = vmax.f32 %v1857, 0.0
          %v1972 = vmax.f32 %v1862, 0.0
          %v1973 = vmax.f32 %v1867, 0.0
          %v1974 = vmax.f32 %v1872, 0.0
          %v1975 = vmax.f32 %v1877, 0.0
          %v1976 = vmax.f32 %v1882, 0.0
          %v1977 = vmax.f32 %v1887, 0.0
          %v1978 = vmax.f32 %v1892, 0.0
          %v1979 = vmax.f32 %v1897, 0.0
          %v1980 = vmax.f32 %v1902, 0.0
          %v1981 = vmax.f32 %v1907, 0.0
          %v1982 = vmax.f32 %v1912, 0.0
          %v1983 = vmax.f32 %v1917, 0.0
          %v1984 = vmax.f32 %v1922, 0.0
          %v1985 = vmax.f32 %v1927, 0.0
          %v1986 = vmax.f32 %v1932, 0.0
          %v1987 = vmax.f32 %v1937, 0.0
          %v1988 = vmax.f32 %v1942, 0.0
          %v1989 = vmax.f32 %v1947, 0.0
          %v1990 = vmax.f32 %v1952, 0.0
          %v1991 = vmax.f32 %v1957, 0.0
          %v1992 = vmul.f32 %v1960, %v1960
          %v1993 = vmul.f32 %v1961, %v1961
          %v1994 = vmul.f32 %v1962, %v1962
          %v1995 = vmul.f32 %v1963, %v1963
          %v1996 = vmul.f32 %v1964, %v1964
          %v1997 = vmul.f32 %v1965, %v1965
          %v1998 = vmul.f32 %v1966, %v1966
          %v1999 = vmul.f32 %v1967, %v1967
          %v2000 = vmul.f32 %v1968, %v1968
          %v2001 = vmul.f32 %v1969, %v1969
          %v2002 = vmul.f32 %v1970, %v1970
          %v2003 = vmul.f32 %v1971, %v1971
          %v2004 = vmul.f32 %v1972, %v1972
          %v2005 = vmul.f32 %v1973, %v1973
          %v2006 = vmul.f32 %v1974, %v1974
          %v2007 = vmul.f32 %v1975, %v1975
          %v2008 = vmul.f32 %v1976, %v1976
          %v2009 = vmul.f32 %v1977, %v1977
          %v2010 = vmul.f32 %v1978, %v1978
          %v2011 = vmul.f32 %v1979, %v1979
          %v2012 = vmul.f32 %v1980, %v1980
          %v2013 = vmul.f32 %v1981, %v1981
          %v2014 = vmul.f32 %v1982, %v1982
          %v2015 = vmul.f32 %v1983, %v1983
          %v2016 = vmul.f32 %v1984, %v1984
          %v2017 = vmul.f32 %v1985, %v1985
          %v2018 = vmul.f32 %v1986, %v1986
          %v2019 = vmul.f32 %v1987, %v1987
          %v2020 = vmul.f32 %v1988, %v1988
          %v2021 = vmul.f32 %v1989, %v1989
          %v2022 = vmul.f32 %v1990, %v1990
          %v2023 = vmul.f32 %v1991, %v1991
          %2024 = vadd.xlane.f32.xlu0 %v1992
          %v2025 = vpop.xlane.xlu0 %2024
          %2026 = vadd.xlane.f32.xlu0 %v1993
          %v2027 = vpop.xlane.xlu0 %2026
          %2028 = vadd.xlane.f32.xlu0 %v1994
          %v2029 = vpop.xlane.xlu0 %2028
          %2030 = vadd.xlane.f32.xlu0 %v1995
          %v2031 = vpop.xlane.xlu0 %2030
          %2032 = vadd.xlane.f32.xlu0 %v1996
          %v2033 = vpop.xlane.xlu0 %2032
          %2034 = vadd.xlane.f32.xlu0 %v1997
          %v2035 = vpop.xlane.xlu0 %2034
          %2036 = vadd.xlane.f32.xlu0 %v1998
          %v2037 = vpop.xlane.xlu0 %2036
          %2038 = vadd.xlane.f32.xlu0 %v1999
          %v2039 = vpop.xlane.xlu0 %2038
          %2040 = vadd.xlane.f32.xlu0 %v2000
          %v2041 = vpop.xlane.xlu0 %2040
          %2042 = vadd.xlane.f32.xlu0 %v2001
          %v2043 = vpop.xlane.xlu0 %2042
          %2044 = vadd.xlane.f32.xlu0 %v2002
          %v2045 = vpop.xlane.xlu0 %2044
          %2046 = vadd.xlane.f32.xlu0 %v2003
          %v2047 = vpop.xlane.xlu0 %2046
          %2048 = vadd.xlane.f32.xlu0 %v2004
          %v2049 = vpop.xlane.xlu0 %2048
          %2050 = vadd.xlane.f32.xlu0 %v2005
          %v2051 = vpop.xlane.xlu0 %2050
          %2052 = vadd.xlane.f32.xlu0 %v2006
          %v2053 = vpop.xlane.xlu0 %2052
          %2054 = vadd.xlane.f32.xlu0 %v2007
          %v2055 = vpop.xlane.xlu0 %2054
          %2056 = vadd.xlane.f32.xlu0 %v2008
          %v2057 = vpop.xlane.xlu0 %2056
          %2058 = vadd.xlane.f32.xlu0 %v2009
          %v2059 = vpop.xlane.xlu0 %2058
          %2060 = vadd.xlane.f32.xlu0 %v2010
          %v2061 = vpop.xlane.xlu0 %2060
          %2062 = vadd.xlane.f32.xlu0 %v2011
          %v2063 = vpop.xlane.xlu0 %2062
          %2064 = vadd.xlane.f32.xlu0 %v2012
          %v2065 = vpop.xlane.xlu0 %2064
          %2066 = vadd.xlane.f32.xlu0 %v2013
          %v2067 = vpop.xlane.xlu0 %2066
          %2068 = vadd.xlane.f32.xlu0 %v2014
          %v2069 = vpop.xlane.xlu0 %2068
          %2070 = vadd.xlane.f32.xlu0 %v2015
          %v2071 = vpop.xlane.xlu0 %2070
          %2072 = vadd.xlane.f32.xlu0 %v2016
          %v2073 = vpop.xlane.xlu0 %2072
          %2074 = vadd.xlane.f32.xlu0 %v2017
          %v2075 = vpop.xlane.xlu0 %2074
          %2076 = vadd.xlane.f32.xlu0 %v2018
          %v2077 = vpop.xlane.xlu0 %2076
          %2078 = vadd.xlane.f32.xlu0 %v2019
          %v2079 = vpop.xlane.xlu0 %2078
          %2080 = vadd.xlane.f32.xlu0 %v2020
          %v2081 = vpop.xlane.xlu0 %2080
          %2082 = vadd.xlane.f32.xlu0 %v2021
          %v2083 = vpop.xlane.xlu0 %2082
          %2084 = vadd.xlane.f32.xlu0 %v2022
          %v2085 = vpop.xlane.xlu0 %2084
          %2086 = vadd.xlane.f32.xlu0 %v2023
          %v2087 = vpop.xlane.xlu0 %2086
          %v2088 = vmax.f32 %v2025, 1e-24
          %v2089 = vmax.f32 %v2027, 1e-24
          %v2090 = vmax.f32 %v2029, 1e-24
          %v2091 = vmax.f32 %v2031, 1e-24
          %v2092 = vmax.f32 %v2033, 1e-24
          %v2093 = vmax.f32 %v2035, 1e-24
          %v2094 = vmax.f32 %v2037, 1e-24
          %v2095 = vmax.f32 %v2039, 1e-24
          %v2096 = vmax.f32 %v2041, 1e-24
          %v2097 = vmax.f32 %v2043, 1e-24
          %v2098 = vmax.f32 %v2045, 1e-24
          %v2099 = vmax.f32 %v2047, 1e-24
          %v2100 = vmax.f32 %v2049, 1e-24
          %v2101 = vmax.f32 %v2051, 1e-24
          %v2102 = vmax.f32 %v2053, 1e-24
          %v2103 = vmax.f32 %v2055, 1e-24
          %v2104 = vmax.f32 %v2057, 1e-24
          %v2105 = vmax.f32 %v2059, 1e-24
          %v2106 = vmax.f32 %v2061, 1e-24
          %v2107 = vmax.f32 %v2063, 1e-24
          %v2108 = vmax.f32 %v2065, 1e-24
          %v2109 = vmax.f32 %v2067, 1e-24
          %v2110 = vmax.f32 %v2069, 1e-24
          %v2111 = vmax.f32 %v2071, 1e-24
          %v2112 = vmax.f32 %v2073, 1e-24
          %v2113 = vmax.f32 %v2075, 1e-24
          %v2114 = vmax.f32 %v2077, 1e-24
          %v2115 = vmax.f32 %v2079, 1e-24
          %v2116 = vmax.f32 %v2081, 1e-24
          %v2117 = vmax.f32 %v2083, 1e-24
          %v2118 = vmax.f32 %v2085, 1e-24
          %v2119 = vmax.f32 %v2087, 1e-24
          %v2120 = vrsqrt.pop %v2088
          %v2121 = vrsqrt.pop %v2089
          %v2122 = vrsqrt.pop %v2090
          %v2123 = vrsqrt.pop %v2091
          %v2124 = vrsqrt.pop %v2092
          %v2125 = vrsqrt.pop %v2093
          %v2126 = vrsqrt.pop %v2094
          %v2127 = vrsqrt.pop %v2095
          %v2128 = vrsqrt.pop %v2096
          %v2129 = vrsqrt.pop %v2097
          %v2130 = vrsqrt.pop %v2098
          %v2131 = vrsqrt.pop %v2099
          %v2132 = vrsqrt.pop %v2100
          %v2133 = vrsqrt.pop %v2101
          %v2134 = vrsqrt.pop %v2102
          %v2135 = vrsqrt.pop %v2103
          %v2136 = vrsqrt.pop %v2104
          %v2137 = vrsqrt.pop %v2105
          %v2138 = vrsqrt.pop %v2106
          %v2139 = vrsqrt.pop %v2107
          %v2140 = vrsqrt.pop %v2108
          %v2141 = vrsqrt.pop %v2109
          %v2142 = vrsqrt.pop %v2110
          %v2143 = vrsqrt.pop %v2111
          %v2144 = vrsqrt.pop %v2112
          %v2145 = vrsqrt.pop %v2113
          %v2146 = vrsqrt.pop %v2114
          %v2147 = vrsqrt.pop %v2115
          %v2148 = vrsqrt.pop %v2116
          %v2149 = vrsqrt.pop %v2117
          %v2150 = vrsqrt.pop %v2118
          %v2151 = vrsqrt.pop %v2119
          %v2152 = vmul.f32 %v1960, %v2120
          %v2153 = vmul.f32 %v1961, %v2121
          %v2154 = vmul.f32 %v1962, %v2122
          %v2155 = vmul.f32 %v1963, %v2123
          %v2156 = vmul.f32 %v1964, %v2124
          %v2157 = vmul.f32 %v1965, %v2125
          %v2158 = vmul.f32 %v1966, %v2126
          %v2159 = vmul.f32 %v1967, %v2127
          %v2160 = vmul.f32 %v1968, %v2128
          %v2161 = vmul.f32 %v1969, %v2129
          %v2162 = vmul.f32 %v1970, %v2130
          %v2163 = vmul.f32 %v1971, %v2131
          %v2164 = vmul.f32 %v1972, %v2132
          %v2165 = vmul.f32 %v1973, %v2133
          %v2166 = vmul.f32 %v1974, %v2134
          %v2167 = vmul.f32 %v1975, %v2135
          %v2168 = vmul.f32 %v1976, %v2136
          %v2169 = vmul.f32 %v1977, %v2137
          %v2170 = vmul.f32 %v1978, %v2138
          %v2171 = vmul.f32 %v1979, %v2139
          %v2172 = vmul.f32 %v1980, %v2140
          %v2173 = vmul.f32 %v1981, %v2141
          %v2174 = vmul.f32 %v1982, %v2142
          %v2175 = vmul.f32 %v1983, %v2143
          %v2176 = vmul.f32 %v1984, %v2144
          %v2177 = vmul.f32 %v1985, %v2145
          %v2178 = vmul.f32 %v1986, %v2146
          %v2179 = vmul.f32 %v1987, %v2147
          %v2180 = vmul.f32 %v1988, %v2148
          %v2181 = vmul.f32 %v1989, %v2149
          %v2182 = vmul.f32 %v1990, %v2150
          %v2183 = vmul.f32 %v1991, %v2151
          %v2184 = vadd.f32 %v1697, %v2152
          %v2185 = vadd.f32 %v1698, %v2153
          %v2186 = vadd.f32 %v1699, %v2154
          %v2187 = vadd.f32 %v1700, %v2155
          %v2188 = vadd.f32 %v1701, %v2156
          %v2189 = vadd.f32 %v1702, %v2157
          %v2190 = vadd.f32 %v1703, %v2158
          %v2191 = vadd.f32 %v1704, %v2159
          %v2192 = vadd.f32 %v1705, %v2160
          %v2193 = vadd.f32 %v1706, %v2161
          %v2194 = vadd.f32 %v1707, %v2162
          %v2195 = vadd.f32 %v1708, %v2163
          %v2196 = vadd.f32 %v1709, %v2164
          %v2197 = vadd.f32 %v1710, %v2165
          %v2198 = vadd.f32 %v1711, %v2166
          %v2199 = vadd.f32 %v1712, %v2167
          %v2200 = vadd.f32 %v1713, %v2168
          %v2201 = vadd.f32 %v1714, %v2169
          %v2202 = vadd.f32 %v1715, %v2170
          %v2203 = vadd.f32 %v1716, %v2171
          %v2204 = vadd.f32 %v1717, %v2172
          %v2205 = vadd.f32 %v1718, %v2173
          %v2206 = vadd.f32 %v1719, %v2174
          %v2207 = vadd.f32 %v1720, %v2175
          %v2208 = vadd.f32 %v1721, %v2176
          %v2209 = vadd.f32 %v1722, %v2177
          %v2210 = vadd.f32 %v1723, %v2178
          %v2211 = vadd.f32 %v1724, %v2179
          %v2212 = vadd.f32 %v1725, %v2180
          %v2213 = vadd.f32 %v1726, %v2181
          %v2214 = vadd.f32 %v1727, %v2182
          %v2215 = vadd.f32 %v1728, %v2183
          %v2216 = vmul.f32 %v2184, %v2184
          %v2217 = vmul.f32 %v2185, %v2185
          %v2218 = vmul.f32 %v2186, %v2186
          %v2219 = vmul.f32 %v2187, %v2187
          %v2220 = vmul.f32 %v2188, %v2188
          %v2221 = vmul.f32 %v2189, %v2189
          %v2222 = vmul.f32 %v2190, %v2190
          %v2223 = vmul.f32 %v2191, %v2191
          %v2224 = vmul.f32 %v2192, %v2192
          %v2225 = vmul.f32 %v2193, %v2193
          %v2226 = vmul.f32 %v2194, %v2194
          %v2227 = vmul.f32 %v2195, %v2195
          %v2228 = vmul.f32 %v2196, %v2196
          %v2229 = vmul.f32 %v2197, %v2197
          %v2230 = vmul.f32 %v2198, %v2198
          %v2231 = vmul.f32 %v2199, %v2199
          %v2232 = vmul.f32 %v2200, %v2200
          %v2233 = vmul.f32 %v2201, %v2201
          %v2234 = vmul.f32 %v2202, %v2202
          %v2235 = vmul.f32 %v2203, %v2203
          %v2236 = vmul.f32 %v2204, %v2204
          %v2237 = vmul.f32 %v2205, %v2205
          %v2238 = vmul.f32 %v2206, %v2206
          %v2239 = vmul.f32 %v2207, %v2207
          %v2240 = vmul.f32 %v2208, %v2208
          %v2241 = vmul.f32 %v2209, %v2209
          %v2242 = vmul.f32 %v2210, %v2210
          %v2243 = vmul.f32 %v2211, %v2211
          %v2244 = vmul.f32 %v2212, %v2212
          %v2245 = vmul.f32 %v2213, %v2213
          %v2246 = vmul.f32 %v2214, %v2214
          %v2247 = vmul.f32 %v2215, %v2215
          %2248 = vadd.xlane.f32.xlu0 %v2216
          %v2249 = vpop.xlane.xlu0 %2248
          %2250 = vadd.xlane.f32.xlu0 %v2217
          %v2251 = vpop.xlane.xlu0 %2250
          %2252 = vadd.xlane.f32.xlu0 %v2218
          %v2253 = vpop.xlane.xlu0 %2252
          %2254 = vadd.xlane.f32.xlu0 %v2219
          %v2255 = vpop.xlane.xlu0 %2254
          %2256 = vadd.xlane.f32.xlu0 %v2220
          %v2257 = vpop.xlane.xlu0 %2256
          %2258 = vadd.xlane.f32.xlu0 %v2221
          %v2259 = vpop.xlane.xlu0 %2258
          %2260 = vadd.xlane.f32.xlu0 %v2222
          %v2261 = vpop.xlane.xlu0 %2260
          %2262 = vadd.xlane.f32.xlu0 %v2223
          %v2263 = vpop.xlane.xlu0 %2262
          %2264 = vadd.xlane.f32.xlu0 %v2224
          %v2265 = vpop.xlane.xlu0 %2264
          %2266 = vadd.xlane.f32.xlu0 %v2225
          %v2267 = vpop.xlane.xlu0 %2266
          %2268 = vadd.xlane.f32.xlu0 %v2226
          %v2269 = vpop.xlane.xlu0 %2268
          %2270 = vadd.xlane.f32.xlu0 %v2227
          %v2271 = vpop.xlane.xlu0 %2270
          %2272 = vadd.xlane.f32.xlu0 %v2228
          %v2273 = vpop.xlane.xlu0 %2272
          %2274 = vadd.xlane.f32.xlu0 %v2229
          %v2275 = vpop.xlane.xlu0 %2274
          %2276 = vadd.xlane.f32.xlu0 %v2230
          %v2277 = vpop.xlane.xlu0 %2276
          %2278 = vadd.xlane.f32.xlu0 %v2231
          %v2279 = vpop.xlane.xlu0 %2278
          %2280 = vadd.xlane.f32.xlu0 %v2232
          %v2281 = vpop.xlane.xlu0 %2280
          %2282 = vadd.xlane.f32.xlu0 %v2233
          %v2283 = vpop.xlane.xlu0 %2282
          %2284 = vadd.xlane.f32.xlu0 %v2234
          %v2285 = vpop.xlane.xlu0 %2284
          %2286 = vadd.xlane.f32.xlu0 %v2235
          %v2287 = vpop.xlane.xlu0 %2286
          %2288 = vadd.xlane.f32.xlu0 %v2236
          %v2289 = vpop.xlane.xlu0 %2288
          %2290 = vadd.xlane.f32.xlu0 %v2237
          %v2291 = vpop.xlane.xlu0 %2290
          %2292 = vadd.xlane.f32.xlu0 %v2238
          %v2293 = vpop.xlane.xlu0 %2292
          %2294 = vadd.xlane.f32.xlu0 %v2239
          %v2295 = vpop.xlane.xlu0 %2294
          %2296 = vadd.xlane.f32.xlu0 %v2240
          %v2297 = vpop.xlane.xlu0 %2296
          %2298 = vadd.xlane.f32.xlu0 %v2241
          %v2299 = vpop.xlane.xlu0 %2298
          %2300 = vadd.xlane.f32.xlu0 %v2242
          %v2301 = vpop.xlane.xlu0 %2300
          %2302 = vadd.xlane.f32.xlu0 %v2243
          %v2303 = vpop.xlane.xlu0 %2302
          %2304 = vadd.xlane.f32.xlu0 %v2244
          %v2305 = vpop.xlane.xlu0 %2304
          %2306 = vadd.xlane.f32.xlu0 %v2245
          %v2307 = vpop.xlane.xlu0 %2306
          %2308 = vadd.xlane.f32.xlu0 %v2246
          %v2309 = vpop.xlane.xlu0 %2308
          %2310 = vadd.xlane.f32.xlu0 %v2247
          %v2311 = vpop.xlane.xlu0 %2310
          %v2312 = vmax.f32 %v2249, 1e-24
          %v2313 = vmax.f32 %v2251, 1e-24
          %v2314 = vmax.f32 %v2253, 1e-24
          %v2315 = vmax.f32 %v2255, 1e-24
          %v2316 = vmax.f32 %v2257, 1e-24
          %v2317 = vmax.f32 %v2259, 1e-24
          %v2318 = vmax.f32 %v2261, 1e-24
          %v2319 = vmax.f32 %v2263, 1e-24
          %v2320 = vmax.f32 %v2265, 1e-24
          %v2321 = vmax.f32 %v2267, 1e-24
          %v2322 = vmax.f32 %v2269, 1e-24
          %v2323 = vmax.f32 %v2271, 1e-24
          %v2324 = vmax.f32 %v2273, 1e-24
          %v2325 = vmax.f32 %v2275, 1e-24
          %v2326 = vmax.f32 %v2277, 1e-24
          %v2327 = vmax.f32 %v2279, 1e-24
          %v2328 = vmax.f32 %v2281, 1e-24
          %v2329 = vmax.f32 %v2283, 1e-24
          %v2330 = vmax.f32 %v2285, 1e-24
          %v2331 = vmax.f32 %v2287, 1e-24
          %v2332 = vmax.f32 %v2289, 1e-24
          %v2333 = vmax.f32 %v2291, 1e-24
          %v2334 = vmax.f32 %v2293, 1e-24
          %v2335 = vmax.f32 %v2295, 1e-24
          %v2336 = vmax.f32 %v2297, 1e-24
          %v2337 = vmax.f32 %v2299, 1e-24
          %v2338 = vmax.f32 %v2301, 1e-24
          %v2339 = vmax.f32 %v2303, 1e-24
          %v2340 = vmax.f32 %v2305, 1e-24
          %v2341 = vmax.f32 %v2307, 1e-24
          %v2342 = vmax.f32 %v2309, 1e-24
          %v2343 = vmax.f32 %v2311, 1e-24
          %v2344 = vrsqrt.pop %v2312
          %v2345 = vrsqrt.pop %v2313
          %v2346 = vrsqrt.pop %v2314
          %v2347 = vrsqrt.pop %v2315
          %v2348 = vrsqrt.pop %v2316
          %v2349 = vrsqrt.pop %v2317
          %v2350 = vrsqrt.pop %v2318
          %v2351 = vrsqrt.pop %v2319
          %v2352 = vrsqrt.pop %v2320
          %v2353 = vrsqrt.pop %v2321
          %v2354 = vrsqrt.pop %v2322
          %v2355 = vrsqrt.pop %v2323
          %v2356 = vrsqrt.pop %v2324
          %v2357 = vrsqrt.pop %v2325
          %v2358 = vrsqrt.pop %v2326
          %v2359 = vrsqrt.pop %v2327
          %v2360 = vrsqrt.pop %v2328
          %v2361 = vrsqrt.pop %v2329
          %v2362 = vrsqrt.pop %v2330
          %v2363 = vrsqrt.pop %v2331
          %v2364 = vrsqrt.pop %v2332
          %v2365 = vrsqrt.pop %v2333
          %v2366 = vrsqrt.pop %v2334
          %v2367 = vrsqrt.pop %v2335
          %v2368 = vrsqrt.pop %v2336
          %v2369 = vrsqrt.pop %v2337
          %v2370 = vrsqrt.pop %v2338
          %v2371 = vrsqrt.pop %v2339
          %v2372 = vrsqrt.pop %v2340
          %v2373 = vrsqrt.pop %v2341
          %v2374 = vrsqrt.pop %v2342
          %v2375 = vrsqrt.pop %v2343
          %v2376 = vmul.f32 %v2184, %v2344
          %v2377 = vmul.f32 %v2185, %v2345
          %v2378 = vmul.f32 %v2186, %v2346
          %v2379 = vmul.f32 %v2187, %v2347
          %v2380 = vmul.f32 %v2188, %v2348
          %v2381 = vmul.f32 %v2189, %v2349
          %v2382 = vmul.f32 %v2190, %v2350
          %v2383 = vmul.f32 %v2191, %v2351
          %v2384 = vmul.f32 %v2192, %v2352
          %v2385 = vmul.f32 %v2193, %v2353
          %v2386 = vmul.f32 %v2194, %v2354
          %v2387 = vmul.f32 %v2195, %v2355
          %v2388 = vmul.f32 %v2196, %v2356
          %v2389 = vmul.f32 %v2197, %v2357
          %v2390 = vmul.f32 %v2198, %v2358
          %v2391 = vmul.f32 %v2199, %v2359
          %v2392 = vmul.f32 %v2200, %v2360
          %v2393 = vmul.f32 %v2201, %v2361
          %v2394 = vmul.f32 %v2202, %v2362
          %v2395 = vmul.f32 %v2203, %v2363
          %v2396 = vmul.f32 %v2204, %v2364
          %v2397 = vmul.f32 %v2205, %v2365
          %v2398 = vmul.f32 %v2206, %v2366
          %v2399 = vmul.f32 %v2207, %v2367
          %v2400 = vmul.f32 %v2208, %v2368
          %v2401 = vmul.f32 %v2209, %v2369
          %v2402 = vmul.f32 %v2210, %v2370
          %v2403 = vmul.f32 %v2211, %v2371
          %v2404 = vmul.f32 %v2212, %v2372
          %v2405 = vmul.f32 %v2213, %v2373
          %v2406 = vmul.f32 %v2214, %v2374
          %v2407 = vmul.f32 %v2215, %v2375
          %2408 = vst [vmem:[#allocation2] sm:$0xff] %v2376
          %2409 = vst [vmem:[#allocation2 + $0x8] sm:$0xff] %v2377
          %2410 = vst [vmem:[#allocation2 + $0x10] sm:$0xff] %v2378
          %2411 = vst [vmem:[#allocation2 + $0x18] sm:$0xff] %v2379
          %2412 = vst [vmem:[#allocation2 + $0x20] sm:$0xff] %v2380
          %2413 = vst [vmem:[#allocation2 + $0x28] sm:$0xff] %v2381
          %2414 = vst [vmem:[#allocation2 + $0x30] sm:$0xff] %v2382
          %2415 = vst [vmem:[#allocation2 + $0x38] sm:$0xff] %v2383
          %2416 = vst [vmem:[#allocation2 + $0x40] sm:$0xff] %v2384
          %2417 = vst [vmem:[#allocation2 + $0x48] sm:$0xff] %v2385
          %2418 = vst [vmem:[#allocation2 + $0x50] sm:$0xff] %v2386
          %2419 = vst [vmem:[#allocation2 + $0x58] sm:$0xff] %v2387
          %2420 = vst [vmem:[#allocation2 + $0x60] sm:$0xff] %v2388
          %2421 = vst [vmem:[#allocation2 + $0x68] sm:$0xff] %v2389
          %2422 = vst [vmem:[#allocation2 + $0x70] sm:$0xff] %v2390
          %2423 = vst [vmem:[#allocation2 + $0x78] sm:$0xff] %v2391
          %2424 = vst [vmem:[#allocation2 + $0x80] sm:$0xff] %v2392
          %2425 = vst [vmem:[#allocation2 + $0x88] sm:$0xff] %v2393
          %2426 = vst [vmem:[#allocation2 + $0x90] sm:$0xff] %v2394
          %2427 = vst [vmem:[#allocation2 + $0x98] sm:$0xff] %v2395
          %2428 = vst [vmem:[#allocation2 + $0xa0] sm:$0xff] %v2396
          %2429 = vst [vmem:[#allocation2 + $0xa8] sm:$0xff] %v2397
          %2430 = vst [vmem:[#allocation2 + $0xb0] sm:$0xff] %v2398
          %2431 = vst [vmem:[#allocation2 + $0xb8] sm:$0xff] %v2399
          %2432 = vst [vmem:[#allocation2 + $0xc0] sm:$0xff] %v2400
          %2433 = vst [vmem:[#allocation2 + $0xc8] sm:$0xff] %v2401
          %2434 = vst [vmem:[#allocation2 + $0xd0] sm:$0xff] %v2402
          %2435 = vst [vmem:[#allocation2 + $0xd8] sm:$0xff] %v2403
          %2436 = vst [vmem:[#allocation2 + $0xe0] sm:$0xff] %v2404
          %2437 = vst [vmem:[#allocation2 + $0xe8] sm:$0xff] %v2405
          %2438 = vst [vmem:[#allocation2 + $0xf0] sm:$0xff] %v2406
          %2439 = vst [vmem:[#allocation2 + $0xf8] sm:$0xff] %v2407
          // Predicated region
          $region57: #{tpu_custom_call.1} parent=55 // pred_check
            _
          $region58: #{tpu_custom_call.1} parent=55 // pred_check_branch
            %2441 = sbr.rel target = $region60
          $region59: #{tpu_custom_call.1} parent=55 // pred_region
            %2442 = sst [smem:[#allocation14]] [#allocation17]
            %2443 = sst [smem:[#allocation15]] [#allocation16]
          $region60: #{tpu_custom_call.1} parent=55 // pred_fallthru
            _
          %2445 = shalt.err (0)
          %s2447 = sshll.u32 [#allocation2], 4
          %s2448 = int_to_ptr.vmem [resolvable:$true] %s2447
          %2450 = dma.vmem_to_hbm [thread:$0]  %s2448, 4096, %s4, [#allocation7]
          %s2451 = smul.u32 256, 1
          %s2452 = sshll.u32 %s2451, 4
          %2453 = dma.done [#allocation7], %s2452
        $region56: #{tpu_custom_call.1} parent=31 // pred_fallthru
          _
      $region32: #{tpu_custom_call.1} parent=5 // pred_fallthru
        _
    $region6: #{tpu_custom_call.1} parent=1 // loop_footer
      %s20 = sadd.s32 1, %s16
    $region7: #{tpu_custom_call.1} parent=1 // loop_footer_branch
      %15 = sbr.rel target = $region3
    $region8: #{tpu_custom_call.1} parent=1 // loop_exit
      _
    %2454 = vsyncpa [#allocation9], 1
    %s2455 = scalar_lea.sflag [#allocation9], 1
    %2456 = vsyncpa %s2455, 1
    %2457 = vsyncpa [#allocation11], 1
    %s2458 = scalar_lea.sflag [#allocation11], 1
    %2459 = vsyncpa %s2458, 1
  %2460 = vsyncmov [#allocation7]
  %s2461 = vpop.sfrf %2460
  %p2462 = scmp.eq.s32.totalorder %s2461, 0
  %p2463 = pneg %p2462
  %2465 = shalt.err (%p2463)

</llo_original>
